<compile_context>
chip_gen: v6e
topology: v6e:2x2x1
jax: 0.10.0
libtpu: 0.0.40
codegen_flags: <defaults>
</compile_context>

<pallas_src>
import functools
import math

import jax
import jax.numpy as jnp
import numpy as np
from jax import lax
from jax.experimental import pallas as pl
from jax.experimental.pallas import tpu as pltpu

BN_EPS = 1e-5
# 3x3 taps in row-major (ky, kx) order, as (dy, dx) = (ky-1, kx-1).
_TAPS = tuple((dy, dx) for dy in (-1, 0, 1) for dx in (-1, 0, 1))


def _round_up(x, m):
    return (x + m - 1) // m * m


def _residual_block_kernel(x_ref, w1_ref, w2_ref, ws_ref,
                           g1_ref, b1_ref, g2_ref, b2_ref, mask_ref,
                           o_ref, xpad_ref, *,
                           N, W, HW, P, cin, cout, cp_in, cp_out, pad_l, identity):
    # x_ref   : (N, Cin, H*W)          input, channel-major per image, flat spatial
    # w1_ref  : (Cp_in, 9*Cp_in)       conv1 weights, columns ordered (tap, ci)
    # w2_ref  : (Cp_out, 9*Cp_in)      conv2 weights
    # ws_ref  : (Cp_out, Cp_in)        1x1 shortcut weights (ignored if identity)
    # g*/b*   : (Cp, 1)                BatchNorm affine params (zero in pad rows)
    # mask_ref: (9, 1, P)              per-tap spatial validity mask (0/1)
    # o_ref   : (N, Cout, H*W)         output
    # xpad_ref: (Cp_in, pad_l+P+pad_l) flat lane-padded scratch, reused for x and h1

    # Zero the scratch once so halo lanes and pad channels are exactly 0.
    xpad_ref[...] = jnp.zeros_like(xpad_ref)

    # Stage the input into the scratch interior (channel-major, flat (n, h, w)).
    for n in range(N):
        xpad_ref[:cin, pad_l + n * HW: pad_l + (n + 1) * HW] = x_ref[n]

    def conv3x3(w2d):
        # One fused im2col matmul per conv. Rows of the im2col matrix are
        # (tap, channel); each tap is a static lane-shifted view of the flat
        # padded scratch, zeroed outside the image by the precomputed mask.
        cols = []
        for t, (dy, dx) in enumerate(_TAPS):
            s = dy * W + dx
            piece = xpad_ref[:, pad_l + s: pad_l + s + P]          # (Cp_in, P)
            cols.append(piece * mask_ref[t])                        # mask: (1, P)
        im2col = jnp.concatenate(cols, axis=0)                      # (9*Cp_in, P)
        return jnp.dot(w2d, im2col, preferred_element_type=jnp.float32)

    def batchnorm(acc, g, b):
        # Training-mode BN; single-pass batch stats over all N*H*W positions.
        inv_p = 1.0 / P
        mu = jnp.sum(acc, axis=1, keepdims=True) * inv_p
        ex2 = jnp.sum(acc * acc, axis=1, keepdims=True) * inv_p
        var = jnp.maximum(ex2 - mu * mu, 0.0)
        scale = g * lax.rsqrt(var + BN_EPS)
        return acc * scale + (b - mu * scale)

    # Shortcut / residual (read x before the scratch is reused for h1).
    if identity:
        res = xpad_ref[:, pad_l:pad_l + P]                          # (Cp, P)
    else:
        res = jnp.dot(ws_ref[...], xpad_ref[:, pad_l:pad_l + P],
                      preferred_element_type=jnp.float32)           # (Cp_out, P)

    # conv1 -> BN1 -> ReLU
    acc1 = conv3x3(w1_ref[...])                                     # (Cp_in, P)
    h1 = jnp.maximum(batchnorm(acc1, g1_ref[...], b1_ref[...]), 0.0)

    # Reuse the padded scratch for the second conv's input (halos stay zero).
    xpad_ref[:, pad_l:pad_l + P] = h1

    # conv2 -> BN2, add residual.
    acc2 = conv3x3(w2_ref[...])                                     # (Cp_out, P)
    y = batchnorm(acc2, g2_ref[...], b2_ref[...]) + res

    # Lane-dense output store: one (Cout, H*W) slab per image.
    for n in range(N):
        o_ref[n] = y[:cout, n * HW:(n + 1) * HW].astype(o_ref.dtype)


def residual_conv_block(x_nchw, params):
    """Pallas forward pass. x_nchw: (N, Cin, H, W) float32 -> (N, Cout, H, W)."""
    w1, w2, ws, g1, b1, g2, b2 = params
    N, Cin, H, W = x_nchw.shape
    Cout = w2.shape[-1]
    HW = H * W
    P = N * HW
    Cp_in = _round_up(Cin, 8)
    Cp_out = _round_up(Cout, 8)
    pad_l = _round_up(W + 1, 128)          # 128-aligned interior start, >= max tap shift
    lanes = pad_l + P + pad_l
    identity = (Cin == Cout)               # nn.Identity shortcut in the module

    def conv_weight_2d(w_hwio, cout_p):
        kh, kw, ci, co = w_hwio.shape
        wp = jnp.zeros((kh, kw, Cp_in, cout_p), jnp.float32)
        wp = wp.at[:, :, :ci, :co].set(w_hwio.astype(jnp.float32))
        # -> (cout_p, 9*Cp_in) with column index = tap*Cp_in + ci
        return wp.reshape(kh * kw * Cp_in, cout_p).T

    def bn_param(v, cp):
        return jnp.zeros((cp, 1), jnp.float32).at[:v.shape[0], 0].set(v.astype(jnp.float32))

    w1t = conv_weight_2d(w1, Cp_in)
    w2t = conv_weight_2d(w2, Cp_out)
    if identity:
        wst = jnp.zeros((Cp_out, Cp_in), jnp.float32)               # unused by kernel
    else:
        wst = jnp.zeros((Cp_out, Cp_in), jnp.float32).at[:Cout, :Cin].set(
            ws.T.astype(jnp.float32))
    g1p, b1p = bn_param(g1, Cp_in), bn_param(b1, Cp_in)
    g2p, b2p = bn_param(g2, Cp_out), bn_param(b2, Cp_out)

    # Static per-tap validity masks over the flat (n, h, w) index.
    pidx = np.arange(P)
    wi = pidx % W
    hi = (pidx // W) % H
    mask_np = np.stack([
        ((hi + dy >= 0) & (hi + dy < H) & (wi + dx >= 0) & (wi + dx < W))
        for (dy, dx) in _TAPS]).astype(np.float32).reshape(9, 1, P)
    mask = jnp.asarray(mask_np)

    # Free reshape only (no NCHW->NHWC transpose, no spatial pre-padding in HBM).
    x_flat = x_nchw.reshape(N, Cin, HW).astype(jnp.float32)

    kernel = functools.partial(
        _residual_block_kernel, N=N, W=W, HW=HW, P=P, cin=Cin, cout=Cout,
        cp_in=Cp_in, cp_out=Cp_out, pad_l=pad_l, identity=identity)

    out = pl.pallas_call(
        kernel,
        out_shape=jax.ShapeDtypeStruct((N, Cout, HW), jnp.float32),
        scratch_shapes=[pltpu.VMEM((Cp_in, lanes), jnp.float32)],
    )(x_flat, w1t, w2t, wst, g1p, b1p, g2p, b2p, mask)

    return out.reshape(N, Cout, H, W)


def residual_conv_block_reference(x_nchw, params):
    """Pure-JAX reference (lax.conv) for correctness checking."""
    w1, w2, ws, g1, b1, g2, b2 = params
    x = jnp.transpose(x_nchw, (0, 2, 3, 1)).astype(jnp.float32)

    def bn(z, g, b):
        mu = jnp.mean(z, axis=(0, 1, 2), keepdims=True)
        var = jnp.mean((z - mu) ** 2, axis=(0, 1, 2), keepdims=True)
        return g.reshape(1, 1, 1, -1) * (z - mu) * lax.rsqrt(var + BN_EPS) + b.reshape(1, 1, 1, -1)

    dn1 = lax.conv_dimension_numbers(x.shape, w1.shape, ('NHWC', 'HWIO', 'NHWC'))
    h = lax.conv_general_dilated(x, w1, (1, 1), 'SAME', dimension_numbers=dn1)
    h = jnp.maximum(bn(h, g1, b1), 0.0)
    dn2 = lax.conv_dimension_numbers(h.shape, w2.shape, ('NHWC', 'HWIO', 'NHWC'))
    y = bn(lax.conv_general_dilated(h, w2, (1, 1), 'SAME', dimension_numbers=dn2), g2, b2)
    res = jnp.einsum('nhwc,cd->nhwd', x, ws)
    return jnp.transpose(y + res, (0, 3, 1, 2))


def make_params(key, in_channels, out_channels):
    k1, k2, k3, k4, k5, k6, k7 = jax.random.split(key, 7)
    w1 = jax.random.normal(k1, (3, 3, in_channels, in_channels), jnp.float32) / math.sqrt(9 * in_channels)
    w2 = jax.random.normal(k2, (3, 3, in_channels, out_channels), jnp.float32) / math.sqrt(9 * in_channels)
    if in_channels != out_channels:
        ws = jax.random.normal(k3, (in_channels, out_channels), jnp.float32) / math.sqrt(in_channels)
    else:
        ws = jnp.eye(in_channels, dtype=jnp.float32)  # nn.Identity shortcut
    g1 = 1.0 + 0.1 * jax.random.normal(k4, (in_channels,), jnp.float32)
    b1 = 0.1 * jax.random.normal(k5, (in_channels,), jnp.float32)
    g2 = 1.0 + 0.1 * jax.random.normal(k6, (out_channels,), jnp.float32)
    b2 = 0.1 * jax.random.normal(k7, (out_channels,), jnp.float32)
    return (w1, w2, ws, g1, b1, g2, b2)


if __name__ == "__main__":
    N, Cin, Cout, H, W = 2, 4, 8, 16, 16
    key = jax.random.PRNGKey(0)
    kparam, kx = jax.random.split(key)
    params = make_params(kparam, Cin, Cout)
    x = jax.random.normal(kx, (N, Cin, H, W), jnp.float32)

    out = jax.block_until_ready(residual_conv_block(x, params))
    ref = jax.block_until_ready(residual_conv_block_reference(x, params))

    assert out.shape == (N, Cout, H, W), out.shape
    err = jnp.max(jnp.abs(out - ref))
    assert jnp.allclose(out, ref, atol=1e-3, rtol=1e-3), f"max abs err = {err}"
    print("KERNEL_OK")
</pallas_src>

<mosaic_0001>
module attributes {stable_mosaic.version = 11 : i64} {
  func.func @_residual_block_kernel(%arg0: memref<2x4x256xf32, #tpu.memory_space<vmem>>, %arg1: memref<8x72xf32, #tpu.memory_space<vmem>>, %arg2: memref<8x72xf32, #tpu.memory_space<vmem>>, %arg3: memref<8x8xf32, #tpu.memory_space<vmem>>, %arg4: memref<8x1xf32, #tpu.memory_space<vmem>>, %arg5: memref<8x1xf32, #tpu.memory_space<vmem>>, %arg6: memref<8x1xf32, #tpu.memory_space<vmem>>, %arg7: memref<8x1xf32, #tpu.memory_space<vmem>>, %arg8: memref<9x1x512xf32, #tpu.memory_space<vmem>>, %arg9: memref<2x8x256xf32, #tpu.memory_space<vmem>>, %arg10: memref<8x768xf32, #tpu.memory_space<vmem>>) attributes {dimension_semantics = [], scalar_prefetch = 0 : i64, scratch_operands = 1 : i64, tpu.core_type = #tpu.core_type<tc>} {
    %cst = arith.constant 0.000000e+00 : f32
    %0 = vector.broadcast %cst : f32 to vector<8x768xf32>
    %c0 = arith.constant 0 : index
    %c0_0 = arith.constant 0 : index
    %1 = vector.load %arg10[%c0, %c0_0] : memref<8x768xf32, #tpu.memory_space<vmem>>, vector<8x768xf32>
    tpu.vector_store %arg10[%c0, %c0_0], %0 {strides = array<i32>} : memref<8x768xf32, #tpu.memory_space<vmem>>, vector<8x768xf32>,
    %c0_1 = arith.constant 0 : index
    %c0_2 = arith.constant 0 : index
    %c0_3 = arith.constant 0 : index
    %2 = vector.load %arg0[%c0_1, %c0_2, %c0_3] : memref<2x4x256xf32, #tpu.memory_space<vmem>>, vector<1x4x256xf32>
    %3 = vector.shape_cast %2 : vector<1x4x256xf32> to vector<4x256xf32>
    %c0_4 = arith.constant 0 : index
    %c128 = arith.constant 128 : index
    %4 = vector.load %arg10[%c0_4, %c128] : memref<8x768xf32, #tpu.memory_space<vmem>>, vector<4x256xf32>
    tpu.vector_store %arg10[%c0_4, %c128], %3 {strides = array<i32>} : memref<8x768xf32, #tpu.memory_space<vmem>>, vector<4x256xf32>,
    %c1 = arith.constant 1 : index
    %c0_5 = arith.constant 0 : index
    %c0_6 = arith.constant 0 : index
    %5 = vector.load %arg0[%c1, %c0_5, %c0_6] : memref<2x4x256xf32, #tpu.memory_space<vmem>>, vector<1x4x256xf32>
    %6 = vector.shape_cast %5 : vector<1x4x256xf32> to vector<4x256xf32>
    %c0_7 = arith.constant 0 : index
    %c384 = arith.constant 384 : index
    %7 = vector.load %arg10[%c0_7, %c384] : memref<8x768xf32, #tpu.memory_space<vmem>>, vector<4x256xf32>
    tpu.vector_store %arg10[%c0_7, %c384], %6 {strides = array<i32>} : memref<8x768xf32, #tpu.memory_space<vmem>>, vector<4x256xf32>,
    %c0_8 = arith.constant 0 : index
    %c0_9 = arith.constant 0 : index
    %8 = vector.load %arg3[%c0_8, %c0_9] : memref<8x8xf32, #tpu.memory_space<vmem>>, vector<8x8xf32>
    %c0_10 = arith.constant 0 : index
    %c128_11 = arith.constant 128 : index
    %9 = vector.load %arg10[%c0_10, %c128_11] : memref<8x768xf32, #tpu.memory_space<vmem>>, vector<8x512xf32>
    %cst_12 = arith.constant dense<0.000000e+00> : vector<8x512xf32>
    %10 = tpu.matmul %8, %9, %cst_12 {dimension_numbers = #tpu.dot_dimension_numbers<[1], [0], [0], [1], [0, 0, 1, 1], [], []>} : vector<8x8xf32>, vector<8x512xf32>, vector<8x512xf32> -> vector<8x512xf32>
    %c0_13 = arith.constant 0 : index
    %c0_14 = arith.constant 0 : index
    %11 = vector.load %arg1[%c0_13, %c0_14] : memref<8x72xf32, #tpu.memory_space<vmem>>, vector<8x72xf32>
    %c0_15 = arith.constant 0 : index
    %c111 = arith.constant 111 : index
    %12 = vector.load %arg10[%c0_15, %c111] : memref<8x768xf32, #tpu.memory_space<vmem>>, vector<8x512xf32>
    %c0_16 = arith.constant 0 : index
    %c0_17 = arith.constant 0 : index
    %c0_18 = arith.constant 0 : index
    %13 = vector.load %arg8[%c0_16, %c0_17, %c0_18] : memref<9x1x512xf32, #tpu.memory_space<vmem>>, vector<1x1x512xf32>
    %14 = vector.shape_cast %13 : vector<1x1x512xf32> to vector<1x512xf32>
    %15 = vector.broadcast %14 : vector<1x512xf32> to vector<8x512xf32>
    %16 = arith.mulf %12, %15 : vector<8x512xf32>
    %c0_19 = arith.constant 0 : index
    %c112 = arith.constant 112 : index
    %17 = vector.load %arg10[%c0_19, %c112] : memref<8x768xf32, #tpu.memory_space<vmem>>, vector<8x512xf32>
    %c1_20 = arith.constant 1 : index
    %c0_21 = arith.constant 0 : index
    %c0_22 = arith.constant 0 : index
    %18 = vector.load %arg8[%c1_20, %c0_21, %c0_22] : memref<9x1x512xf32, #tpu.memory_space<vmem>>, vector<1x1x512xf32>
    %19 = vector.shape_cast %18 : vector<1x1x512xf32> to vector<1x512xf32>
    %20 = vector.broadcast %19 : vector<1x512xf32> to vector<8x512xf32>
    %21 = arith.mulf %17, %20 : vector<8x512xf32>
    %c0_23 = arith.constant 0 : index
    %c113 = arith.constant 113 : index
    %22 = vector.load %arg10[%c0_23, %c113] : memref<8x768xf32, #tpu.memory_space<vmem>>, vector<8x512xf32>
    %c2 = arith.constant 2 : index
    %c0_24 = arith.constant 0 : index
    %c0_25 = arith.constant 0 : index
    %23 = vector.load %arg8[%c2, %c0_24, %c0_25] : memref<9x1x512xf32, #tpu.memory_space<vmem>>, vector<1x1x512xf32>
    %24 = vector.shape_cast %23 : vector<1x1x512xf32> to vector<1x512xf32>
    %25 = vector.broadcast %24 : vector<1x512xf32> to vector<8x512xf32>
    %26 = arith.mulf %22, %25 : vector<8x512xf32>
    %c0_26 = arith.constant 0 : index
    %c127 = arith.constant 127 : index
    %27 = vector.load %arg10[%c0_26, %c127] : memref<8x768xf32, #tpu.memory_space<vmem>>, vector<8x512xf32>
    %c3 = arith.constant 3 : index
    %c0_27 = arith.constant 0 : index
    %c0_28 = arith.constant 0 : index
    %28 = vector.load %arg8[%c3, %c0_27, %c0_28] : memref<9x1x512xf32, #tpu.memory_space<vmem>>, vector<1x1x512xf32>
    %29 = vector.shape_cast %28 : vector<1x1x512xf32> to vector<1x512xf32>
    %30 = vector.broadcast %29 : vector<1x512xf32> to vector<8x512xf32>
    %31 = arith.mulf %27, %30 : vector<8x512xf32>
    %c0_29 = arith.constant 0 : index
    %c128_30 = arith.constant 128 : index
    %32 = vector.load %arg10[%c0_29, %c128_30] : memref<8x768xf32, #tpu.memory_space<vmem>>, vector<8x512xf32>
    %c4 = arith.constant 4 : index
    %c0_31 = arith.constant 0 : index
    %c0_32 = arith.constant 0 : index
    %33 = vector.load %arg8[%c4, %c0_31, %c0_32] : memref<9x1x512xf32, #tpu.memory_space<vmem>>, vector<1x1x512xf32>
    %34 = vector.shape_cast %33 : vector<1x1x512xf32> to vector<1x512xf32>
    %35 = vector.broadcast %34 : vector<1x512xf32> to vector<8x512xf32>
    %36 = arith.mulf %32, %35 : vector<8x512xf32>
    %c0_33 = arith.constant 0 : index
    %c129 = arith.constant 129 : index
    %37 = vector.load %arg10[%c0_33, %c129] : memref<8x768xf32, #tpu.memory_space<vmem>>, vector<8x512xf32>
    %c5 = arith.constant 5 : index
    %c0_34 = arith.constant 0 : index
    %c0_35 = arith.constant 0 : index
    %38 = vector.load %arg8[%c5, %c0_34, %c0_35] : memref<9x1x512xf32, #tpu.memory_space<vmem>>, vector<1x1x512xf32>
    %39 = vector.shape_cast %38 : vector<1x1x512xf32> to vector<1x512xf32>
    %40 = vector.broadcast %39 : vector<1x512xf32> to vector<8x512xf32>
    %41 = arith.mulf %37, %40 : vector<8x512xf32>
    %c0_36 = arith.constant 0 : index
    %c143 = arith.constant 143 : index
    %42 = vector.load %arg10[%c0_36, %c143] : memref<8x768xf32, #tpu.memory_space<vmem>>, vector<8x512xf32>
    %c6 = arith.constant 6 : index
    %c0_37 = arith.constant 0 : index
    %c0_38 = arith.constant 0 : index
    %43 = vector.load %arg8[%c6, %c0_37, %c0_38] : memref<9x1x512xf32, #tpu.memory_space<vmem>>, vector<1x1x512xf32>
    %44 = vector.shape_cast %43 : vector<1x1x512xf32> to vector<1x512xf32>
    %45 = vector.broadcast %44 : vector<1x512xf32> to vector<8x512xf32>
    %46 = arith.mulf %42, %45 : vector<8x512xf32>
    %c0_39 = arith.constant 0 : index
    %c144 = arith.constant 144 : index
    %47 = vector.load %arg10[%c0_39, %c144] : memref<8x768xf32, #tpu.memory_space<vmem>>, vector<8x512xf32>
    %c7 = arith.constant 7 : index
    %c0_40 = arith.constant 0 : index
    %c0_41 = arith.constant 0 : index
    %48 = vector.load %arg8[%c7, %c0_40, %c0_41] : memref<9x1x512xf32, #tpu.memory_space<vmem>>, vector<1x1x512xf32>
    %49 = vector.shape_cast %48 : vector<1x1x512xf32> to vector<1x512xf32>
    %50 = vector.broadcast %49 : vector<1x512xf32> to vector<8x512xf32>
    %51 = arith.mulf %47, %50 : vector<8x512xf32>
    %c0_42 = arith.constant 0 : index
    %c145 = arith.constant 145 : index
    %52 = vector.load %arg10[%c0_42, %c145] : memref<8x768xf32, #tpu.memory_space<vmem>>, vector<8x512xf32>
    %c8 = arith.constant 8 : index
    %c0_43 = arith.constant 0 : index
    %c0_44 = arith.constant 0 : index
    %53 = vector.load %arg8[%c8, %c0_43, %c0_44] : memref<9x1x512xf32, #tpu.memory_space<vmem>>, vector<1x1x512xf32>
    %54 = vector.shape_cast %53 : vector<1x1x512xf32> to vector<1x512xf32>
    %55 = vector.broadcast %54 : vector<1x512xf32> to vector<8x512xf32>
    %56 = arith.mulf %52, %55 : vector<8x512xf32>
    %57 = tpu.concatenate %16, %21, %26, %31, %36, %41, %46, %51, %56 in 0 : vector<8x512xf32>, vector<8x512xf32>, vector<8x512xf32>, vector<8x512xf32>, vector<8x512xf32>, vector<8x512xf32>, vector<8x512xf32>, vector<8x512xf32>, vector<8x512xf32> -> vector<72x512xf32>
    %cst_45 = arith.constant dense<0.000000e+00> : vector<8x512xf32>
    %58 = tpu.matmul %11, %57, %cst_45 {dimension_numbers = #tpu.dot_dimension_numbers<[1], [0], [0], [1], [0, 0, 1, 1], [], []>} : vector<8x72xf32>, vector<72x512xf32>, vector<8x512xf32> -> vector<8x512xf32>
    %c0_46 = arith.constant 0 : index
    %c0_47 = arith.constant 0 : index
    %59 = vector.load %arg4[%c0_46, %c0_47] : memref<8x1xf32, #tpu.memory_space<vmem>>, vector<8x1xf32>
    %c0_48 = arith.constant 0 : index
    %c0_49 = arith.constant 0 : index
    %60 = vector.load %arg5[%c0_48, %c0_49] : memref<8x1xf32, #tpu.memory_space<vmem>>, vector<8x1xf32>
    %cst_50 = arith.constant dense<0.000000e+00> : vector<8xf32>
    %61 = vector.multi_reduction <add>, %58, %cst_50 [1] : vector<8x512xf32> to vector<8xf32>
    %62 = vector.shape_cast %61 : vector<8xf32> to vector<8x1xf32>
    %cst_51 = arith.constant 0.001953125 : f32
    %63 = vector.broadcast %cst_51 : f32 to vector<8x1xf32>
    %64 = arith.mulf %62, %63 : vector<8x1xf32>
    %65 = arith.mulf %58, %58 : vector<8x512xf32>
    %cst_52 = arith.constant dense<0.000000e+00> : vector<8xf32>
    %66 = vector.multi_reduction <add>, %65, %cst_52 [1] : vector<8x512xf32> to vector<8xf32>
    %67 = vector.shape_cast %66 : vector<8xf32> to vector<8x1xf32>
    %cst_53 = arith.constant 0.001953125 : f32
    %68 = vector.broadcast %cst_53 : f32 to vector<8x1xf32>
    %69 = arith.mulf %67, %68 : vector<8x1xf32>
    %70 = arith.mulf %64, %64 : vector<8x1xf32>
    %71 = arith.subf %69, %70 : vector<8x1xf32>
    %cst_54 = arith.constant 0.000000e+00 : f32
    %72 = vector.broadcast %cst_54 : f32 to vector<8x1xf32>
    %73 = arith.maximumf %71, %72 : vector<8x1xf32>
    %cst_55 = arith.constant 9.99999974E-6 : f32
    %74 = vector.broadcast %cst_55 : f32 to vector<8x1xf32>
    %75 = arith.addf %73, %74 : vector<8x1xf32>
    %76 = math.rsqrt %75 : vector<8x1xf32>
    %77 = arith.mulf %59, %76 : vector<8x1xf32>
    %78 = vector.broadcast %77 : vector<8x1xf32> to vector<8x512xf32>
    %79 = arith.mulf %58, %78 : vector<8x512xf32>
    %80 = arith.mulf %64, %77 : vector<8x1xf32>
    %81 = arith.subf %60, %80 : vector<8x1xf32>
    %82 = vector.broadcast %81 : vector<8x1xf32> to vector<8x512xf32>
    %83 = arith.addf %79, %82 : vector<8x512xf32>
    %cst_56 = arith.constant 0.000000e+00 : f32
    %84 = vector.broadcast %cst_56 : f32 to vector<8x512xf32>
    %85 = arith.maximumf %83, %84 : vector<8x512xf32>
    %c0_57 = arith.constant 0 : index
    %c128_58 = arith.constant 128 : index
    %86 = vector.load %arg10[%c0_57, %c128_58] : memref<8x768xf32, #tpu.memory_space<vmem>>, vector<8x512xf32>
    tpu.vector_store %arg10[%c0_57, %c128_58], %85 {strides = array<i32>} : memref<8x768xf32, #tpu.memory_space<vmem>>, vector<8x512xf32>,
    %c0_59 = arith.constant 0 : index
    %c0_60 = arith.constant 0 : index
    %87 = vector.load %arg2[%c0_59, %c0_60] : memref<8x72xf32, #tpu.memory_space<vmem>>, vector<8x72xf32>
    %c0_61 = arith.constant 0 : index
    %c111_62 = arith.constant 111 : index
    %88 = vector.load %arg10[%c0_61, %c111_62] : memref<8x768xf32, #tpu.memory_space<vmem>>, vector<8x512xf32>
    %c0_63 = arith.constant 0 : index
    %c0_64 = arith.constant 0 : index
    %c0_65 = arith.constant 0 : index
    %89 = vector.load %arg8[%c0_63, %c0_64, %c0_65] : memref<9x1x512xf32, #tpu.memory_space<vmem>>, vector<1x1x512xf32>
    %90 = vector.shape_cast %89 : vector<1x1x512xf32> to vector<1x512xf32>
    %91 = vector.broadcast %90 : vector<1x512xf32> to vector<8x512xf32>
    %92 = arith.mulf %88, %91 : vector<8x512xf32>
    %c0_66 = arith.constant 0 : index
    %c112_67 = arith.constant 112 : index
    %93 = vector.load %arg10[%c0_66, %c112_67] : memref<8x768xf32, #tpu.memory_space<vmem>>, vector<8x512xf32>
    %c1_68 = arith.constant 1 : index
    %c0_69 = arith.constant 0 : index
    %c0_70 = arith.constant 0 : index
    %94 = vector.load %arg8[%c1_68, %c0_69, %c0_70] : memref<9x1x512xf32, #tpu.memory_space<vmem>>, vector<1x1x512xf32>
    %95 = vector.shape_cast %94 : vector<1x1x512xf32> to vector<1x512xf32>
    %96 = vector.broadcast %95 : vector<1x512xf32> to vector<8x512xf32>
    %97 = arith.mulf %93, %96 : vector<8x512xf32>
    %c0_71 = arith.constant 0 : index
    %c113_72 = arith.constant 113 : index
    %98 = vector.load %arg10[%c0_71, %c113_72] : memref<8x768xf32, #tpu.memory_space<vmem>>, vector<8x512xf32>
    %c2_73 = arith.constant 2 : index
    %c0_74 = arith.constant 0 : index
    %c0_75 = arith.constant 0 : index
    %99 = vector.load %arg8[%c2_73, %c0_74, %c0_75] : memref<9x1x512xf32, #tpu.memory_space<vmem>>, vector<1x1x512xf32>
    %100 = vector.shape_cast %99 : vector<1x1x512xf32> to vector<1x512xf32>
    %101 = vector.broadcast %100 : vector<1x512xf32> to vector<8x512xf32>
    %102 = arith.mulf %98, %101 : vector<8x512xf32>
    %c0_76 = arith.constant 0 : index
    %c127_77 = arith.constant 127 : index
    %103 = vector.load %arg10[%c0_76, %c127_77] : memref<8x768xf32, #tpu.memory_space<vmem>>, vector<8x512xf32>
    %c3_78 = arith.constant 3 : index
    %c0_79 = arith.constant 0 : index
    %c0_80 = arith.constant 0 : index
    %104 = vector.load %arg8[%c3_78, %c0_79, %c0_80] : memref<9x1x512xf32, #tpu.memory_space<vmem>>, vector<1x1x512xf32>
    %105 = vector.shape_cast %104 : vector<1x1x512xf32> to vector<1x512xf32>
    %106 = vector.broadcast %105 : vector<1x512xf32> to vector<8x512xf32>
    %107 = arith.mulf %103, %106 : vector<8x512xf32>
    %c0_81 = arith.constant 0 : index
    %c128_82 = arith.constant 128 : index
    %108 = vector.load %arg10[%c0_81, %c128_82] : memref<8x768xf32, #tpu.memory_space<vmem>>, vector<8x512xf32>
    %c4_83 = arith.constant 4 : index
    %c0_84 = arith.constant 0 : index
    %c0_85 = arith.constant 0 : index
    %109 = vector.load %arg8[%c4_83, %c0_84, %c0_85] : memref<9x1x512xf32, #tpu.memory_space<vmem>>, vector<1x1x512xf32>
    %110 = vector.shape_cast %109 : vector<1x1x512xf32> to vector<1x512xf32>
    %111 = vector.broadcast %110 : vector<1x512xf32> to vector<8x512xf32>
    %112 = arith.mulf %108, %111 : vector<8x512xf32>
    %c0_86 = arith.constant 0 : index
    %c129_87 = arith.constant 129 : index
    %113 = vector.load %arg10[%c0_86, %c129_87] : memref<8x768xf32, #tpu.memory_space<vmem>>, vector<8x512xf32>
    %c5_88 = arith.constant 5 : index
    %c0_89 = arith.constant 0 : index
    %c0_90 = arith.constant 0 : index
    %114 = vector.load %arg8[%c5_88, %c0_89, %c0_90] : memref<9x1x512xf32, #tpu.memory_space<vmem>>, vector<1x1x512xf32>
    %115 = vector.shape_cast %114 : vector<1x1x512xf32> to vector<1x512xf32>
    %116 = vector.broadcast %115 : vector<1x512xf32> to vector<8x512xf32>
    %117 = arith.mulf %113, %116 : vector<8x512xf32>
    %c0_91 = arith.constant 0 : index
    %c143_92 = arith.constant 143 : index
    %118 = vector.load %arg10[%c0_91, %c143_92] : memref<8x768xf32, #tpu.memory_space<vmem>>, vector<8x512xf32>
    %c6_93 = arith.constant 6 : index
    %c0_94 = arith.constant 0 : index
    %c0_95 = arith.constant 0 : index
    %119 = vector.load %arg8[%c6_93, %c0_94, %c0_95] : memref<9x1x512xf32, #tpu.memory_space<vmem>>, vector<1x1x512xf32>
    %120 = vector.shape_cast %119 : vector<1x1x512xf32> to vector<1x512xf32>
    %121 = vector.broadcast %120 : vector<1x512xf32> to vector<8x512xf32>
    %122 = arith.mulf %118, %121 : vector<8x512xf32>
    %c0_96 = arith.constant 0 : index
    %c144_97 = arith.constant 144 : index
    %123 = vector.load %arg10[%c0_96, %c144_97] : memref<8x768xf32, #tpu.memory_space<vmem>>, vector<8x512xf32>
    %c7_98 = arith.constant 7 : index
    %c0_99 = arith.constant 0 : index
    %c0_100 = arith.constant 0 : index
    %124 = vector.load %arg8[%c7_98, %c0_99, %c0_100] : memref<9x1x512xf32, #tpu.memory_space<vmem>>, vector<1x1x512xf32>
    %125 = vector.shape_cast %124 : vector<1x1x512xf32> to vector<1x512xf32>
    %126 = vector.broadcast %125 : vector<1x512xf32> to vector<8x512xf32>
    %127 = arith.mulf %123, %126 : vector<8x512xf32>
    %c0_101 = arith.constant 0 : index
    %c145_102 = arith.constant 145 : index
    %128 = vector.load %arg10[%c0_101, %c145_102] : memref<8x768xf32, #tpu.memory_space<vmem>>, vector<8x512xf32>
    %c8_103 = arith.constant 8 : index
    %c0_104 = arith.constant 0 : index
    %c0_105 = arith.constant 0 : index
    %129 = vector.load %arg8[%c8_103, %c0_104, %c0_105] : memref<9x1x512xf32, #tpu.memory_space<vmem>>, vector<1x1x512xf32>
    %130 = vector.shape_cast %129 : vector<1x1x512xf32> to vector<1x512xf32>
    %131 = vector.broadcast %130 : vector<1x512xf32> to vector<8x512xf32>
    %132 = arith.mulf %128, %131 : vector<8x512xf32>
    %133 = tpu.concatenate %92, %97, %102, %107, %112, %117, %122, %127, %132 in 0 : vector<8x512xf32>, vector<8x512xf32>, vector<8x512xf32>, vector<8x512xf32>, vector<8x512xf32>, vector<8x512xf32>, vector<8x512xf32>, vector<8x512xf32>, vector<8x512xf32> -> vector<72x512xf32>
    %cst_106 = arith.constant dense<0.000000e+00> : vector<8x512xf32>
    %134 = tpu.matmul %87, %133, %cst_106 {dimension_numbers = #tpu.dot_dimension_numbers<[1], [0], [0], [1], [0, 0, 1, 1], [], []>} : vector<8x72xf32>, vector<72x512xf32>, vector<8x512xf32> -> vector<8x512xf32>
    %c0_107 = arith.constant 0 : index
    %c0_108 = arith.constant 0 : index
    %135 = vector.load %arg6[%c0_107, %c0_108] : memref<8x1xf32, #tpu.memory_space<vmem>>, vector<8x1xf32>
    %c0_109 = arith.constant 0 : index
    %c0_110 = arith.constant 0 : index
    %136 = vector.load %arg7[%c0_109, %c0_110] : memref<8x1xf32, #tpu.memory_space<vmem>>, vector<8x1xf32>
    %cst_111 = arith.constant dense<0.000000e+00> : vector<8xf32>
    %137 = vector.multi_reduction <add>, %134, %cst_111 [1] : vector<8x512xf32> to vector<8xf32>
    %138 = vector.shape_cast %137 : vector<8xf32> to vector<8x1xf32>
    %cst_112 = arith.constant 0.001953125 : f32
    %139 = vector.broadcast %cst_112 : f32 to vector<8x1xf32>
    %140 = arith.mulf %138, %139 : vector<8x1xf32>
    %141 = arith.mulf %134, %134 : vector<8x512xf32>
    %cst_113 = arith.constant dense<0.000000e+00> : vector<8xf32>
    %142 = vector.multi_reduction <add>, %141, %cst_113 [1] : vector<8x512xf32> to vector<8xf32>
    %143 = vector.shape_cast %142 : vector<8xf32> to vector<8x1xf32>
    %cst_114 = arith.constant 0.001953125 : f32
    %144 = vector.broadcast %cst_114 : f32 to vector<8x1xf32>
    %145 = arith.mulf %143, %144 : vector<8x1xf32>
    %146 = arith.mulf %140, %140 : vector<8x1xf32>
    %147 = arith.subf %145, %146 : vector<8x1xf32>
    %cst_115 = arith.constant 0.000000e+00 : f32
    %148 = vector.broadcast %cst_115 : f32 to vector<8x1xf32>
    %149 = arith.maximumf %147, %148 : vector<8x1xf32>
    %cst_116 = arith.constant 9.99999974E-6 : f32
    %150 = vector.broadcast %cst_116 : f32 to vector<8x1xf32>
    %151 = arith.addf %149, %150 : vector<8x1xf32>
    %152 = math.rsqrt %151 : vector<8x1xf32>
    %153 = arith.mulf %135, %152 : vector<8x1xf32>
    %154 = vector.broadcast %153 : vector<8x1xf32> to vector<8x512xf32>
    %155 = arith.mulf %134, %154 : vector<8x512xf32>
    %156 = arith.mulf %140, %153 : vector<8x1xf32>
    %157 = arith.subf %136, %156 : vector<8x1xf32>
    %158 = vector.broadcast %157 : vector<8x1xf32> to vector<8x512xf32>
    %159 = arith.addf %155, %158 : vector<8x512xf32>
    %160 = arith.addf %159, %10 : vector<8x512xf32>
    %161 = vector.extract_strided_slice %160 {offsets = [0, 0], sizes = [8, 256], strides = [1, 1]} : vector<8x512xf32> to vector<8x256xf32>
    %c0_117 = arith.constant 0 : index
    %c0_118 = arith.constant 0 : index
    %c0_119 = arith.constant 0 : index
    %162 = vector.load %arg9[%c0_117, %c0_118, %c0_119] : memref<2x8x256xf32, #tpu.memory_space<vmem>>, vector<1x8x256xf32>
    %163 = vector.shape_cast %162 : vector<1x8x256xf32> to vector<8x256xf32>
    %164 = vector.shape_cast %161 : vector<8x256xf32> to vector<1x8x256xf32>
    tpu.vector_store %arg9[%c0_117, %c0_118, %c0_119], %164 {strides = array<i32>} : memref<2x8x256xf32, #tpu.memory_space<vmem>>, vector<1x8x256xf32>,
    %165 = vector.extract_strided_slice %160 {offsets = [0, 256], sizes = [8, 256], strides = [1, 1]} : vector<8x512xf32> to vector<8x256xf32>
    %c1_120 = arith.constant 1 : index
    %c0_121 = arith.constant 0 : index
    %c0_122 = arith.constant 0 : index
    %166 = vector.load %arg9[%c1_120, %c0_121, %c0_122] : memref<2x8x256xf32, #tpu.memory_space<vmem>>, vector<1x8x256xf32>
    %167 = vector.shape_cast %166 : vector<1x8x256xf32> to vector<8x256xf32>
    %168 = vector.shape_cast %165 : vector<8x256xf32> to vector<1x8x256xf32>
    tpu.vector_store %arg9[%c1_120, %c0_121, %c0_122], %168 {strides = array<i32>} : memref<2x8x256xf32, #tpu.memory_space<vmem>>, vector<1x8x256xf32>,
    return
  }
}

</mosaic_0001>

<llo_original>
// kernel: tpu_custom_call.1
$region0: #{tpu_custom_call.1}
  #allocation0 [shape = 'u32[]', space=smem, size = 0x4, offset = 0x4, fixed_abs, tag = 'smem constant byte address 0x4 - core index']
  #allocation1 [shape = 'u32[144,128]{1,0:T(1,128)}', space=vmem, size = 0x12000, scoped, tag = 'internal scratch']
  #allocation2 [shape = 'f32[8,768]{1,0:T(8,128)}', space=vmem, size = 0x6000, scoped, tag = 'scratch operand']
  %s0 = inlined_call_operand.hbm [shape: f32[2,4,256], index: 0, kind: input, shape index: {}]
  %s1 = inlined_call_operand.vmem [shape: f32[8,72], index: 1, kind: input, shape index: {}]
  %s2 = inlined_call_operand.hbm [shape: f32[8,72], index: 2, kind: input, shape index: {}]
  %s3 = inlined_call_operand.hbm [shape: f32[8,8], index: 3, kind: input, shape index: {}]
  %s4 = inlined_call_operand.vmem [shape: f32[8,1], index: 4, kind: input, shape index: {}]
  %s5 = inlined_call_operand.vmem [shape: f32[8,1], index: 5, kind: input, shape index: {}]
  %s6 = inlined_call_operand.vmem [shape: f32[8,1], index: 6, kind: input, shape index: {}]
  %s7 = inlined_call_operand.vmem [shape: f32[8,1], index: 7, kind: input, shape index: {}]
  %s8 = inlined_call_operand.vmem [shape: f32[9,1,512], index: 8, kind: input, shape index: {}]
  %s9 = inlined_call_operand.hbm [shape: f32[2,8,256], index: 9, kind: output, shape index: {}]
  %s10 = sld [smem:[#allocation0]]
  $region58: #{tpu_custom_call.1} parent=0
    _
  %s12 = ssub.s32 1, %s10
  %s13 = scalar_select 0, %s12, %s10
  $region1: #{tpu_custom_call.1} parent=0
    #allocation3 [shape = 'u8[8192]{0}', space=vmem, size = 0x2000, scoped, tag = 'input window, operand 0, single buffered']
    #allocation4 [shape = 's32[1]{0}', space=sflag, size = 0x4, scoped, tag = 'scoped memory for tpu_custom_call.1']
    #allocation5 [shape = 's32[1]{0}', space=sflag, size = 0x4, scoped, tag = 'scoped memory for tpu_custom_call.1']
    #allocation6 [shape = 'u8[4096]{0}', space=vmem, size = 0x1000, scoped, tag = 'input window, operand 2, single buffered']
    #allocation7 [shape = 's32[1]{0}', space=sflag, size = 0x4, scoped, tag = 'scoped memory for tpu_custom_call.1']
    #allocation8 [shape = 'u8[4096]{0}', space=vmem, size = 0x1000, scoped, tag = 'input window, operand 3, single buffered']
    #allocation9 [shape = 'u8[16384]{0}', space=vmem, size = 0x4000, scoped, tag = 'output window, operand 0, single buffered']
    %14 = vsyncpa [#allocation4], 0
    %15 = vsyncpa [#allocation7], 0
    %16 = vsyncpa [#allocation5], 0
    // Predicated region
    $region2: #{tpu_custom_call.1} parent=1 // pred_check
      _
    $region3: #{tpu_custom_call.1} parent=1 // pred_check_branch
      %18 = sbr.rel (0) target = $region5
    $region4: #{tpu_custom_call.1} parent=1 // pred_region
      %s20 = ssub.s32 256, 256
      %21 = vsyncadd [#allocation4], %s20
      %s22 = sshll.u32 [#allocation3], 4
      %s23 = int_to_ptr.vmem [resolvable:$true] %s22
      %28 = dma.hbm_to_vmem [thread:$0]  %s0, 256, %s23, [#allocation4], 128, 128, 8
    $region5: #{tpu_custom_call.1} parent=1 // pred_fallthru
      _
    // Predicated region
    $region6: #{tpu_custom_call.1} parent=1 // pred_check
      _
    $region7: #{tpu_custom_call.1} parent=1 // pred_check_branch
      %30 = sbr.rel (0) target = $region9
    $region8: #{tpu_custom_call.1} parent=1 // pred_region
      _
    $region9: #{tpu_custom_call.1} parent=1 // pred_fallthru
      _
    // Predicated region
    $region10: #{tpu_custom_call.1} parent=1 // pred_check
      _
    $region11: #{tpu_custom_call.1} parent=1 // pred_check_branch
      %32 = sbr.rel (0) target = $region13
    $region12: #{tpu_custom_call.1} parent=1 // pred_region
      %s34 = ssub.s32 128, 128
      %35 = vsyncadd [#allocation7], %s34
      %s37 = sshll.u32 [#allocation6], 4
      %s38 = int_to_ptr.vmem [resolvable:$true] %s37
      %40 = dma.hbm_to_vmem [thread:$0]  %s2, 128, %s38, [#allocation7]
    $region13: #{tpu_custom_call.1} parent=1 // pred_fallthru
      _
    // Predicated region
    $region14: #{tpu_custom_call.1} parent=1 // pred_check
      _
    $region15: #{tpu_custom_call.1} parent=1 // pred_check_branch
      %42 = sbr.rel (0) target = $region17
    $region16: #{tpu_custom_call.1} parent=1 // pred_region
      %s44 = ssub.s32 128, 128
      %45 = vsyncadd [#allocation7], %s44
      %s47 = sshll.u32 [#allocation8], 4
      %s48 = int_to_ptr.vmem [resolvable:$true] %s47
      %50 = dma.hbm_to_vmem [thread:$0]  %s3, 128, %s48, [#allocation7]
    $region17: #{tpu_custom_call.1} parent=1 // pred_fallthru
      _
    // Predicated region
    $region18: #{tpu_custom_call.1} parent=1 // pred_check
      _
    $region19: #{tpu_custom_call.1} parent=1 // pred_check_branch
      %52 = sbr.rel (0) target = $region21
    $region20: #{tpu_custom_call.1} parent=1 // pred_region
      _
    $region21: #{tpu_custom_call.1} parent=1 // pred_fallthru
      _
    // Predicated region
    $region22: #{tpu_custom_call.1} parent=1 // pred_check
      _
    $region23: #{tpu_custom_call.1} parent=1 // pred_check_branch
      %54 = sbr.rel (0) target = $region25
    $region24: #{tpu_custom_call.1} parent=1 // pred_region
      _
    $region25: #{tpu_custom_call.1} parent=1 // pred_fallthru
      _
    // Predicated region
    $region26: #{tpu_custom_call.1} parent=1 // pred_check
      _
    $region27: #{tpu_custom_call.1} parent=1 // pred_check_branch
      %56 = sbr.rel (0) target = $region29
    $region28: #{tpu_custom_call.1} parent=1 // pred_region
      _
    $region29: #{tpu_custom_call.1} parent=1 // pred_fallthru
      _
    // Predicated region
    $region30: #{tpu_custom_call.1} parent=1 // pred_check
      _
    $region31: #{tpu_custom_call.1} parent=1 // pred_check_branch
      %58 = sbr.rel (0) target = $region33
    $region32: #{tpu_custom_call.1} parent=1 // pred_region
      _
    $region33: #{tpu_custom_call.1} parent=1 // pred_fallthru
      _
    // Predicated region
    $region34: #{tpu_custom_call.1} parent=1 // pred_check
      _
    $region35: #{tpu_custom_call.1} parent=1 // pred_check_branch
      %60 = sbr.rel (0) target = $region37
    $region36: #{tpu_custom_call.1} parent=1 // pred_region
      _
    $region37: #{tpu_custom_call.1} parent=1 // pred_fallthru
      _
    // Predicated region
    $region38: #{tpu_custom_call.1} parent=1 // pred_check
      _
    $region39: #{tpu_custom_call.1} parent=1 // pred_check_branch
      %62 = sbr.rel (0) target = $region41
    $region40: #{tpu_custom_call.1} parent=1 // pred_region
      %63 = dma.done [#allocation4], 256
    $region41: #{tpu_custom_call.1} parent=1 // pred_fallthru
      _
    // Predicated region
    $region42: #{tpu_custom_call.1} parent=1 // pred_check
      _
    $region43: #{tpu_custom_call.1} parent=1 // pred_check_branch
      %65 = sbr.rel (0) target = $region45
    $region44: #{tpu_custom_call.1} parent=1 // pred_region
      %66 = dma.done [#allocation7], 128
    $region45: #{tpu_custom_call.1} parent=1 // pred_fallthru
      _
    // Predicated region
    $region46: #{tpu_custom_call.1} parent=1 // pred_check
      _
    $region47: #{tpu_custom_call.1} parent=1 // pred_check_branch
      %68 = sbr.rel (0) target = $region49
    $region48: #{tpu_custom_call.1} parent=1 // pred_region
      %69 = dma.done [#allocation7], 128
    $region49: #{tpu_custom_call.1} parent=1 // pred_fallthru
      _
    %70 = vst [vmem:[#allocation2] sm:$0xff] 0.0
    %71 = vst [vmem:[#allocation2 + $0x8] sm:$0xff] 0.0
    %72 = vst [vmem:[#allocation2 + $0x10] sm:$0xff] 0.0
    %73 = vst [vmem:[#allocation2 + $0x18] sm:$0xff] 0.0
    %74 = vst [vmem:[#allocation2 + $0x20] sm:$0xff] 0.0
    %75 = vst [vmem:[#allocation2 + $0x28] sm:$0xff] 0.0
    %v76 = vld [vmem:[#allocation3] sm:$0xff]
    %v78 = vcombine.high %v76, %v76
    %80 = vst [vmem:[#allocation2 + $0x8] sm:$0xf] %v76
    %81 = vst [vmem:[#allocation2 + $0x10] sm:$0xf] %v78
    %s82 = scalar_lea.vmem [#allocation3], 8
    %v83 = vld [vmem:[%s82] sm:$0xff]
    %v85 = vcombine.high %v83, %v83
    %87 = vst [vmem:[#allocation2 + $0x18] sm:$0xf] %v83
    %88 = vst [vmem:[#allocation2 + $0x20] sm:$0xf] %v85
    %v89 = vld [vmem:[#allocation8] sm:$0xff]
    %v90 = vld [vmem:[#allocation2 + $0x8] sm:$0xff]
    %v91 = vld [vmem:[#allocation2 + $0x10] sm:$0xff]
    %v92 = vld [vmem:[#allocation2 + $0x18] sm:$0xff]
    %v93 = vld [vmem:[#allocation2 + $0x20] sm:$0xff]
    %vm94 = vcmask 64512
    %v96 = vsel %vm94, %v89, 0
    %98 = vmatprep.subr.mxu0 0.0
    %99 = vmatpush1.msra.mxu0 0.0
    %100 = vmatprep.subr.mxu0 0.0
    %101 = vmatpush1.msra.mxu0 0.0
    %102 = vmatprep.subr.mxu0 0.0
    %103 = vmatpush1.msra.mxu0 0.0
    %104 = vmatprep.subr.mxu0 0.0
    %105 = vmatpush1.msra.mxu0 0.0
    %106 = vmatprep.subr.mxu0 0.0
    %107 = vmatpush1.msra.mxu0 0.0
    %108 = vmatprep.subr.mxu0 0.0
    %109 = vmatpush1.msra.mxu0 0.0
    %110 = vmatprep.subr.mxu0 0.0
    %111 = vmatpush1.msra.mxu0 0.0
    %112 = vmatprep.subr.mxu0 0.0
    %113 = vmatpush1.msra.mxu0 0.0
    %114 = vmatprep.subr.mxu0 0.0
    %115 = vmatpush1.msra.mxu0 0.0
    %116 = vmatprep.subr.mxu0 0.0
    %117 = vmatpush1.msra.mxu0 0.0
    %118 = vmatprep.subr.mxu0 0.0
    %119 = vmatpush1.msra.mxu0 0.0
    %120 = vmatprep.subr.mxu0 0.0
    %121 = vmatpush1.msra.mxu0 0.0
    %122 = vmatprep.subr.mxu0 0.0
    %123 = vmatpush1.msra.mxu0 0.0
    %124 = vmatprep.subr.mxu0 0.0
    %125 = vmatpush1.msra.mxu0 0.0
    %126 = vmatprep.subr.mxu0 0.0
    %127 = vmatpush1.msra.mxu0 0.0
    %128 = vmatprep.subr.mxu0 %v91
    %129 = vmatpush1.msra.mxu0 %v90
    %130 = vmatprep.subr.mxu0 0.0
    %131 = vmatpush2.msra.mxu0 0.0
    %132 = vmatprep.subr.mxu0 0.0
    %133 = vmatpush2.msra.mxu0 0.0
    %134 = vmatprep.subr.mxu0 0.0
    %135 = vmatpush2.msra.mxu0 0.0
    %136 = vmatprep.subr.mxu0 0.0
    %137 = vmatpush2.msra.mxu0 0.0
    %138 = vmatprep.subr.mxu0 0.0
    %139 = vmatpush2.msra.mxu0 0.0
    %140 = vmatprep.subr.mxu0 0.0
    %141 = vmatpush2.msra.mxu0 0.0
    %142 = vmatprep.subr.mxu0 0.0
    %143 = vmatpush2.msra.mxu0 0.0
    %144 = vmatprep.subr.mxu0 0.0
    %145 = vmatpush2.msra.mxu0 0.0
    %146 = vmatprep.subr.mxu0 0.0
    %147 = vmatpush2.msra.mxu0 0.0
    %148 = vmatprep.subr.mxu0 0.0
    %149 = vmatpush2.msra.mxu0 0.0
    %150 = vmatprep.subr.mxu0 0.0
    %151 = vmatpush2.msra.mxu0 0.0
    %152 = vmatprep.subr.mxu0 0.0
    %153 = vmatpush2.msra.mxu0 0.0
    %154 = vmatprep.subr.mxu0 0.0
    %155 = vmatpush2.msra.mxu0 0.0
    %156 = vmatprep.subr.mxu0 0.0
    %157 = vmatpush2.msra.mxu0 0.0
    %158 = vmatprep.subr.mxu0 0.0
    %159 = vmatpush2.msra.mxu0 0.0
    %160 = vmatprep.subr.mxu0 0.0
    %161 = vmatpush2.msra.mxu0 0.0
    %162 = vmatprep.mubr.f32.mxu0 0.0
    %163 = vmatmul.mubr.f32.gmra.mxu0 %v96
    %v164 = vpop.f32.mrf.mxu0
    %v165 = vadd.f32 0.0, %v164
    %v166 = vpop.f32.mrf.mxu0
    %v167 = vadd.f32 0.0, %v166
    %168 = vdwg.mxu0
    %169 = vmatprep.subr.mxu0 0.0
    %170 = vmatpush1.msra.mxu0 0.0
    %171 = vmatprep.subr.mxu0 0.0
    %172 = vmatpush1.msra.mxu0 0.0
    %173 = vmatprep.subr.mxu0 0.0
    %174 = vmatpush1.msra.mxu0 0.0
    %175 = vmatprep.subr.mxu0 0.0
    %176 = vmatpush1.msra.mxu0 0.0
    %177 = vmatprep.subr.mxu0 0.0
    %178 = vmatpush1.msra.mxu0 0.0
    %179 = vmatprep.subr.mxu0 0.0
    %180 = vmatpush1.msra.mxu0 0.0
    %181 = vmatprep.subr.mxu0 0.0
    %182 = vmatpush1.msra.mxu0 0.0
    %183 = vmatprep.subr.mxu0 0.0
    %184 = vmatpush1.msra.mxu0 0.0
    %185 = vmatprep.subr.mxu0 0.0
    %186 = vmatpush1.msra.mxu0 0.0
    %187 = vmatprep.subr.mxu0 0.0
    %188 = vmatpush1.msra.mxu0 0.0
    %189 = vmatprep.subr.mxu0 0.0
    %190 = vmatpush1.msra.mxu0 0.0
    %191 = vmatprep.subr.mxu0 0.0
    %192 = vmatpush1.msra.mxu0 0.0
    %193 = vmatprep.subr.mxu0 0.0
    %194 = vmatpush1.msra.mxu0 0.0
    %195 = vmatprep.subr.mxu0 0.0
    %196 = vmatpush1.msra.mxu0 0.0
    %197 = vmatprep.subr.mxu0 0.0
    %198 = vmatpush1.msra.mxu0 0.0
    %199 = vmatprep.subr.mxu0 %v93
    %200 = vmatpush1.msra.mxu0 %v92
    %201 = vmatprep.subr.mxu0 0.0
    %202 = vmatpush2.msra.mxu0 0.0
    %203 = vmatprep.subr.mxu0 0.0
    %204 = vmatpush2.msra.mxu0 0.0
    %205 = vmatprep.subr.mxu0 0.0
    %206 = vmatpush2.msra.mxu0 0.0
    %207 = vmatprep.subr.mxu0 0.0
    %208 = vmatpush2.msra.mxu0 0.0
    %209 = vmatprep.subr.mxu0 0.0
    %210 = vmatpush2.msra.mxu0 0.0
    %211 = vmatprep.subr.mxu0 0.0
    %212 = vmatpush2.msra.mxu0 0.0
    %213 = vmatprep.subr.mxu0 0.0
    %214 = vmatpush2.msra.mxu0 0.0
    %215 = vmatprep.subr.mxu0 0.0
    %216 = vmatpush2.msra.mxu0 0.0
    %217 = vmatprep.subr.mxu0 0.0
    %218 = vmatpush2.msra.mxu0 0.0
    %219 = vmatprep.subr.mxu0 0.0
    %220 = vmatpush2.msra.mxu0 0.0
    %221 = vmatprep.subr.mxu0 0.0
    %222 = vmatpush2.msra.mxu0 0.0
    %223 = vmatprep.subr.mxu0 0.0
    %224 = vmatpush2.msra.mxu0 0.0
    %225 = vmatprep.subr.mxu0 0.0
    %226 = vmatpush2.msra.mxu0 0.0
    %227 = vmatprep.subr.mxu0 0.0
    %228 = vmatpush2.msra.mxu0 0.0
    %229 = vmatprep.subr.mxu0 0.0
    %230 = vmatpush2.msra.mxu0 0.0
    %231 = vmatprep.subr.mxu0 0.0
    %232 = vmatpush2.msra.mxu0 0.0
    %233 = vmatprep.mubr.f32.mxu0 0.0
    %234 = vmatmul.mubr.f32.gmra.mxu0 %v96
    %v235 = vpop.f32.mrf.mxu0
    %v236 = vadd.f32 0.0, %v235
    %v237 = vpop.f32.mrf.mxu0
    %v238 = vadd.f32 0.0, %v237
    %239 = vdwg.mxu0
    %v240 = vld [vmem:[%s1] sm:$0xff]
    %v241 = vld [vmem:[#allocation2] sm:$0xff]
    %v242 = vld [vmem:[%s8] sm:$0xf]
    %v244 = vlaneseq
    %v245 = vshrl.u32 %v244, 7
    %v246 = vsub.s32 0, %v245
    %v247 = vrot.slane %v242, %v246
    %v248 = vlaneseq
    %v249 = vshrl.u32 %v248, 7
    %v250 = vsub.s32 1, %v249
    %v251 = vrot.slane %v242, %v250
    %v252 = vlaneseq
    %v253 = vshrl.u32 %v252, 7
    %v254 = vsub.s32 2, %v253
    %v255 = vrot.slane %v242, %v254
    %v256 = vlaneseq
    %v257 = vshrl.u32 %v256, 7
    %v258 = vsub.s32 3, %v257
    %v259 = vrot.slane %v242, %v258
    %260 = vrot.lane.b32.xlu0 %v247, 111
    %v261 = vpop.permute.xlu0 %260
    %262 = vrot.lane.b32.xlu0 %v251, 111
    %v263 = vpop.permute.xlu0 %262
    %264 = vrot.lane.b32.xlu0 %v255, 111
    %v265 = vpop.permute.xlu0 %264
    %266 = vrot.lane.b32.xlu0 %v259, 111
    %v267 = vpop.permute.xlu0 %266
    %vm268 = vcmask 908288
    %v269 = vsel %vm268, %v261, %v263
    %v270 = vsel %vm268, %v263, %v265
    %v271 = vsel %vm268, %v265, %v267
    %v277 = vmul.f32 %v241, %v261
    %v278 = vmul.f32 %v90, %v269
    %v279 = vmul.f32 %v91, %v270
    %v280 = vmul.f32 %v92, %v271
    %v281 = vmul.f32 %v93, %v267
    %s282 = scalar_lea.vmem %s8, 4
    %v283 = vld [vmem:[%s282] sm:$0xf]
    %v285 = vlaneseq
    %v286 = vshrl.u32 %v285, 7
    %v287 = vsub.s32 0, %v286
    %v288 = vrot.slane %v283, %v287
    %v289 = vlaneseq
    %v290 = vshrl.u32 %v289, 7
    %v291 = vsub.s32 1, %v290
    %v292 = vrot.slane %v283, %v291
    %v293 = vlaneseq
    %v294 = vshrl.u32 %v293, 7
    %v295 = vsub.s32 2, %v294
    %v296 = vrot.slane %v283, %v295
    %v297 = vlaneseq
    %v298 = vshrl.u32 %v297, 7
    %v299 = vsub.s32 3, %v298
    %v300 = vrot.slane %v283, %v299
    %301 = vrot.lane.b32.xlu0 %v288, 112
    %v302 = vpop.permute.xlu0 %301
    %303 = vrot.lane.b32.xlu0 %v292, 112
    %v304 = vpop.permute.xlu0 %303
    %305 = vrot.lane.b32.xlu0 %v296, 112
    %v306 = vpop.permute.xlu0 %305
    %307 = vrot.lane.b32.xlu0 %v300, 112
    %v308 = vpop.permute.xlu0 %307
    %vm309 = vcmask 916480
    %v310 = vsel %vm309, %v302, %v304
    %v311 = vsel %vm309, %v304, %v306
    %v312 = vsel %vm309, %v306, %v308
    %v318 = vmul.f32 %v241, %v302
    %v319 = vmul.f32 %v90, %v310
    %v320 = vmul.f32 %v91, %v311
    %v321 = vmul.f32 %v92, %v312
    %v322 = vmul.f32 %v93, %v308
    %s323 = scalar_lea.vmem %s8, 8
    %v324 = vld [vmem:[%s323] sm:$0xf]
    %v326 = vlaneseq
    %v327 = vshrl.u32 %v326, 7
    %v328 = vsub.s32 0, %v327
    %v329 = vrot.slane %v324, %v328
    %v330 = vlaneseq
    %v331 = vshrl.u32 %v330, 7
    %v332 = vsub.s32 1, %v331
    %v333 = vrot.slane %v324, %v332
    %v334 = vlaneseq
    %v335 = vshrl.u32 %v334, 7
    %v336 = vsub.s32 2, %v335
    %v337 = vrot.slane %v324, %v336
    %v338 = vlaneseq
    %v339 = vshrl.u32 %v338, 7
    %v340 = vsub.s32 3, %v339
    %v341 = vrot.slane %v324, %v340
    %342 = vrot.lane.b32.xlu0 %v329, 113
    %v343 = vpop.permute.xlu0 %342
    %344 = vrot.lane.b32.xlu0 %v333, 113
    %v345 = vpop.permute.xlu0 %344
    %346 = vrot.lane.b32.xlu0 %v337, 113
    %v347 = vpop.permute.xlu0 %346
    %348 = vrot.lane.b32.xlu0 %v341, 113
    %v349 = vpop.permute.xlu0 %348
    %vm350 = vcmask 924672
    %v351 = vsel %vm350, %v343, %v345
    %v352 = vsel %vm350, %v345, %v347
    %v353 = vsel %vm350, %v347, %v349
    %v359 = vmul.f32 %v241, %v343
    %v360 = vmul.f32 %v90, %v351
    %v361 = vmul.f32 %v91, %v352
    %v362 = vmul.f32 %v92, %v353
    %v363 = vmul.f32 %v93, %v349
    %s364 = scalar_lea.vmem %s8, 12
    %v365 = vld [vmem:[%s364] sm:$0xf]
    %v367 = vlaneseq
    %v368 = vshrl.u32 %v367, 7
    %v369 = vsub.s32 0, %v368
    %v370 = vrot.slane %v365, %v369
    %v371 = vlaneseq
    %v372 = vshrl.u32 %v371, 7
    %v373 = vsub.s32 1, %v372
    %v374 = vrot.slane %v365, %v373
    %v375 = vlaneseq
    %v376 = vshrl.u32 %v375, 7
    %v377 = vsub.s32 2, %v376
    %v378 = vrot.slane %v365, %v377
    %v379 = vlaneseq
    %v380 = vshrl.u32 %v379, 7
    %v381 = vsub.s32 3, %v380
    %v382 = vrot.slane %v365, %v381
    %383 = vrot.lane.b32.xlu0 %v370, 127
    %v384 = vpop.permute.xlu0 %383
    %385 = vrot.lane.b32.xlu0 %v374, 127
    %v386 = vpop.permute.xlu0 %385
    %387 = vrot.lane.b32.xlu0 %v378, 127
    %v388 = vpop.permute.xlu0 %387
    %389 = vrot.lane.b32.xlu0 %v382, 127
    %v390 = vpop.permute.xlu0 %389
    %vm391 = vcmask 1039360
    %v392 = vsel %vm391, %v384, %v386
    %v393 = vsel %vm391, %v386, %v388
    %v394 = vsel %vm391, %v388, %v390
    %v400 = vmul.f32 %v241, %v384
    %v401 = vmul.f32 %v90, %v392
    %v402 = vmul.f32 %v91, %v393
    %v403 = vmul.f32 %v92, %v394
    %v404 = vmul.f32 %v93, %v390
    %s405 = scalar_lea.vmem %s8, 16
    %v406 = vld [vmem:[%s405] sm:$0xf]
    %v408 = vlaneseq
    %v409 = vshrl.u32 %v408, 7
    %v410 = vsub.s32 0, %v409
    %v411 = vrot.slane %v406, %v410
    %v412 = vlaneseq
    %v413 = vshrl.u32 %v412, 7
    %v414 = vsub.s32 1, %v413
    %v415 = vrot.slane %v406, %v414
    %v416 = vlaneseq
    %v417 = vshrl.u32 %v416, 7
    %v418 = vsub.s32 2, %v417
    %v419 = vrot.slane %v406, %v418
    %v420 = vlaneseq
    %v421 = vshrl.u32 %v420, 7
    %v422 = vsub.s32 3, %v421
    %v423 = vrot.slane %v406, %v422
    %v428 = vmul.f32 %v90, %v411
    %v429 = vmul.f32 %v91, %v415
    %v430 = vmul.f32 %v92, %v419
    %v431 = vmul.f32 %v93, %v423
    %v432 = vld [vmem:[#allocation2 + $0x8] sm:$0xff]
    %v433 = vld [vmem:[#allocation2 + $0x10] sm:$0xff]
    %v434 = vld [vmem:[#allocation2 + $0x18] sm:$0xff]
    %v435 = vld [vmem:[#allocation2 + $0x20] sm:$0xff]
    %v436 = vld [vmem:[#allocation2 + $0x28] sm:$0xff]
    %s437 = scalar_lea.vmem %s8, 20
    %v438 = vld [vmem:[%s437] sm:$0xf]
    %v440 = vlaneseq
    %v441 = vshrl.u32 %v440, 7
    %v442 = vsub.s32 0, %v441
    %v443 = vrot.slane %v438, %v442
    %v444 = vlaneseq
    %v445 = vshrl.u32 %v444, 7
    %v446 = vsub.s32 1, %v445
    %v447 = vrot.slane %v438, %v446
    %v448 = vlaneseq
    %v449 = vshrl.u32 %v448, 7
    %v450 = vsub.s32 2, %v449
    %v451 = vrot.slane %v438, %v450
    %v452 = vlaneseq
    %v453 = vshrl.u32 %v452, 7
    %v454 = vsub.s32 3, %v453
    %v455 = vrot.slane %v438, %v454
    %456 = vrot.lane.b32.xlu0 %v443, 1
    %v457 = vpop.permute.xlu0 %456
    %458 = vrot.lane.b32.xlu0 %v447, 1
    %v459 = vpop.permute.xlu0 %458
    %460 = vrot.lane.b32.xlu0 %v451, 1
    %v461 = vpop.permute.xlu0 %460
    %462 = vrot.lane.b32.xlu0 %v455, 1
    %v463 = vpop.permute.xlu0 %462
    %vm464 = vcmask 7168
    %v465 = vsel %vm464, %v457, %v459
    %v466 = vsel %vm464, %v459, %v461
    %v467 = vsel %vm464, %v461, %v463
    %v473 = vmul.f32 %v432, %v457
    %v474 = vmul.f32 %v433, %v465
    %v475 = vmul.f32 %v434, %v466
    %v476 = vmul.f32 %v435, %v467
    %v477 = vmul.f32 %v436, %v463
    %s478 = scalar_lea.vmem %s8, 24
    %v479 = vld [vmem:[%s478] sm:$0xf]
    %v481 = vlaneseq
    %v482 = vshrl.u32 %v481, 7
    %v483 = vsub.s32 0, %v482
    %v484 = vrot.slane %v479, %v483
    %v485 = vlaneseq
    %v486 = vshrl.u32 %v485, 7
    %v487 = vsub.s32 1, %v486
    %v488 = vrot.slane %v479, %v487
    %v489 = vlaneseq
    %v490 = vshrl.u32 %v489, 7
    %v491 = vsub.s32 2, %v490
    %v492 = vrot.slane %v479, %v491
    %v493 = vlaneseq
    %v494 = vshrl.u32 %v493, 7
    %v495 = vsub.s32 3, %v494
    %v496 = vrot.slane %v479, %v495
    %497 = vrot.lane.b32.xlu0 %v484, 15
    %v498 = vpop.permute.xlu0 %497
    %499 = vrot.lane.b32.xlu0 %v488, 15
    %v500 = vpop.permute.xlu0 %499
    %501 = vrot.lane.b32.xlu0 %v492, 15
    %v502 = vpop.permute.xlu0 %501
    %503 = vrot.lane.b32.xlu0 %v496, 15
    %v504 = vpop.permute.xlu0 %503
    %vm505 = vcmask 121856
    %v506 = vsel %vm505, %v498, %v500
    %v507 = vsel %vm505, %v500, %v502
    %v508 = vsel %vm505, %v502, %v504
    %v514 = vmul.f32 %v432, %v498
    %v515 = vmul.f32 %v433, %v506
    %v516 = vmul.f32 %v434, %v507
    %v517 = vmul.f32 %v435, %v508
    %v518 = vmul.f32 %v436, %v504
    %s519 = scalar_lea.vmem %s8, 28
    %v520 = vld [vmem:[%s519] sm:$0xf]
    %v522 = vlaneseq
    %v523 = vshrl.u32 %v522, 7
    %v524 = vsub.s32 0, %v523
    %v525 = vrot.slane %v520, %v524
    %v526 = vlaneseq
    %v527 = vshrl.u32 %v526, 7
    %v528 = vsub.s32 1, %v527
    %v529 = vrot.slane %v520, %v528
    %v530 = vlaneseq
    %v531 = vshrl.u32 %v530, 7
    %v532 = vsub.s32 2, %v531
    %v533 = vrot.slane %v520, %v532
    %v534 = vlaneseq
    %v535 = vshrl.u32 %v534, 7
    %v536 = vsub.s32 3, %v535
    %v537 = vrot.slane %v520, %v536
    %538 = vrot.lane.b32.xlu0 %v525, 16
    %v539 = vpop.permute.xlu0 %538
    %540 = vrot.lane.b32.xlu0 %v529, 16
    %v541 = vpop.permute.xlu0 %540
    %542 = vrot.lane.b32.xlu0 %v533, 16
    %v543 = vpop.permute.xlu0 %542
    %544 = vrot.lane.b32.xlu0 %v537, 16
    %v545 = vpop.permute.xlu0 %544
    %vm546 = vcmask 130048
    %v547 = vsel %vm546, %v539, %v541
    %v548 = vsel %vm546, %v541, %v543
    %v549 = vsel %vm546, %v543, %v545
    %v555 = vmul.f32 %v432, %v539
    %v556 = vmul.f32 %v433, %v547
    %v557 = vmul.f32 %v434, %v548
    %v558 = vmul.f32 %v435, %v549
    %v559 = vmul.f32 %v436, %v545
    %s560 = scalar_lea.vmem %s8, 32
    %v561 = vld [vmem:[%s560] sm:$0xf]
    %v563 = vlaneseq
    %v564 = vshrl.u32 %v563, 7
    %v565 = vsub.s32 0, %v564
    %v566 = vrot.slane %v561, %v565
    %v567 = vlaneseq
    %v568 = vshrl.u32 %v567, 7
    %v569 = vsub.s32 1, %v568
    %v570 = vrot.slane %v561, %v569
    %v571 = vlaneseq
    %v572 = vshrl.u32 %v571, 7
    %v573 = vsub.s32 2, %v572
    %v574 = vrot.slane %v561, %v573
    %v575 = vlaneseq
    %v576 = vshrl.u32 %v575, 7
    %v577 = vsub.s32 3, %v576
    %v578 = vrot.slane %v561, %v577
    %579 = vrot.lane.b32.xlu0 %v566, 17
    %v580 = vpop.permute.xlu0 %579
    %581 = vrot.lane.b32.xlu0 %v570, 17
    %v582 = vpop.permute.xlu0 %581
    %583 = vrot.lane.b32.xlu0 %v574, 17
    %v584 = vpop.permute.xlu0 %583
    %585 = vrot.lane.b32.xlu0 %v578, 17
    %v586 = vpop.permute.xlu0 %585
    %vm587 = vcmask 138240
    %v588 = vsel %vm587, %v580, %v582
    %v589 = vsel %vm587, %v582, %v584
    %v590 = vsel %vm587, %v584, %v586
    %v596 = vmul.f32 %v432, %v580
    %v597 = vmul.f32 %v433, %v588
    %v598 = vmul.f32 %v434, %v589
    %v599 = vmul.f32 %v435, %v590
    %v600 = vmul.f32 %v436, %v586
    %606 = vrot.lane.b32.xlu0 %v318, 127
    %v607 = vpop.permute.xlu0 %606
    %608 = vrot.lane.b32.xlu0 %v319, 127
    %v609 = vpop.permute.xlu0 %608
    %610 = vrot.lane.b32.xlu0 %v320, 127
    %v611 = vpop.permute.xlu0 %610
    %612 = vrot.lane.b32.xlu0 %v321, 127
    %v613 = vpop.permute.xlu0 %612
    %614 = vrot.lane.b32.xlu0 %v322, 127
    %v615 = vpop.permute.xlu0 %614
    %v616 = vsel %vm391, %v607, %v609
    %v617 = vsel %vm391, %v609, %v611
    %v618 = vsel %vm391, %v611, %v613
    %v619 = vsel %vm391, %v613, %v615
    %625 = vrot.lane.b32.xlu0 %v359, 126
    %v626 = vpop.permute.xlu0 %625
    %627 = vrot.lane.b32.xlu0 %v360, 126
    %v628 = vpop.permute.xlu0 %627
    %629 = vrot.lane.b32.xlu0 %v361, 126
    %v630 = vpop.permute.xlu0 %629
    %631 = vrot.lane.b32.xlu0 %v362, 126
    %v632 = vpop.permute.xlu0 %631
    %633 = vrot.lane.b32.xlu0 %v363, 126
    %v634 = vpop.permute.xlu0 %633
    %vm635 = vcmask 1031168
    %v636 = vsel %vm635, %v626, %v628
    %v637 = vsel %vm635, %v628, %v630
    %v638 = vsel %vm635, %v630, %v632
    %v639 = vsel %vm635, %v632, %v634
    %645 = vrot.lane.b32.xlu0 %v400, 112
    %v646 = vpop.permute.xlu0 %645
    %647 = vrot.lane.b32.xlu0 %v401, 112
    %v648 = vpop.permute.xlu0 %647
    %649 = vrot.lane.b32.xlu0 %v402, 112
    %v650 = vpop.permute.xlu0 %649
    %651 = vrot.lane.b32.xlu0 %v403, 112
    %v652 = vpop.permute.xlu0 %651
    %653 = vrot.lane.b32.xlu0 %v404, 112
    %v654 = vpop.permute.xlu0 %653
    %v655 = vsel %vm309, %v646, %v648
    %v656 = vsel %vm309, %v648, %v650
    %v657 = vsel %vm309, %v650, %v652
    %v658 = vsel %vm309, %v652, %v654
    %663 = vrot.lane.b32.xlu0 %v428, 111
    %v664 = vpop.permute.xlu0 %663
    %665 = vrot.lane.b32.xlu0 %v429, 111
    %v666 = vpop.permute.xlu0 %665
    %667 = vrot.lane.b32.xlu0 %v430, 111
    %v668 = vpop.permute.xlu0 %667
    %669 = vrot.lane.b32.xlu0 %v431, 111
    %v670 = vpop.permute.xlu0 %669
    %v671 = vsel %vm268, %v664, %v666
    %v672 = vsel %vm268, %v666, %v668
    %v673 = vsel %vm268, %v668, %v670
    %679 = vrot.lane.b32.xlu0 %v473, 110
    %v680 = vpop.permute.xlu0 %679
    %681 = vrot.lane.b32.xlu0 %v474, 110
    %v682 = vpop.permute.xlu0 %681
    %683 = vrot.lane.b32.xlu0 %v475, 110
    %v684 = vpop.permute.xlu0 %683
    %685 = vrot.lane.b32.xlu0 %v476, 110
    %v686 = vpop.permute.xlu0 %685
    %687 = vrot.lane.b32.xlu0 %v477, 110
    %v688 = vpop.permute.xlu0 %687
    %vm689 = vcmask 900096
    %v690 = vsel %vm689, %v680, %v682
    %v691 = vsel %vm689, %v682, %v684
    %v692 = vsel %vm689, %v684, %v686
    %v693 = vsel %vm689, %v686, %v688
    %699 = vrot.lane.b32.xlu0 %v514, 96
    %v700 = vpop.permute.xlu0 %699
    %701 = vrot.lane.b32.xlu0 %v515, 96
    %v702 = vpop.permute.xlu0 %701
    %703 = vrot.lane.b32.xlu0 %v516, 96
    %v704 = vpop.permute.xlu0 %703
    %705 = vrot.lane.b32.xlu0 %v517, 96
    %v706 = vpop.permute.xlu0 %705
    %707 = vrot.lane.b32.xlu0 %v518, 96
    %v708 = vpop.permute.xlu0 %707
    %vm709 = vcmask 785408
    %v710 = vsel %vm709, %v700, %v702
    %v711 = vsel %vm709, %v702, %v704
    %v712 = vsel %vm709, %v704, %v706
    %v713 = vsel %vm709, %v706, %v708
    %719 = vrot.lane.b32.xlu0 %v555, 95
    %v720 = vpop.permute.xlu0 %719
    %721 = vrot.lane.b32.xlu0 %v556, 95
    %v722 = vpop.permute.xlu0 %721
    %723 = vrot.lane.b32.xlu0 %v557, 95
    %v724 = vpop.permute.xlu0 %723
    %725 = vrot.lane.b32.xlu0 %v558, 95
    %v726 = vpop.permute.xlu0 %725
    %727 = vrot.lane.b32.xlu0 %v559, 95
    %v728 = vpop.permute.xlu0 %727
    %vm729 = vcmask 777216
    %v730 = vsel %vm729, %v720, %v722
    %v731 = vsel %vm729, %v722, %v724
    %v732 = vsel %vm729, %v724, %v726
    %v733 = vsel %vm729, %v726, %v728
    %739 = vrot.lane.b32.xlu0 %v596, 94
    %v740 = vpop.permute.xlu0 %739
    %741 = vrot.lane.b32.xlu0 %v597, 94
    %v742 = vpop.permute.xlu0 %741
    %743 = vrot.lane.b32.xlu0 %v598, 94
    %v744 = vpop.permute.xlu0 %743
    %745 = vrot.lane.b32.xlu0 %v599, 94
    %v746 = vpop.permute.xlu0 %745
    %747 = vrot.lane.b32.xlu0 %v600, 94
    %v748 = vpop.permute.xlu0 %747
    %vm749 = vcmask 769024
    %v750 = vsel %vm749, %v740, %v742
    %v751 = vsel %vm749, %v742, %v744
    %v752 = vsel %vm749, %v744, %v746
    %v753 = vsel %vm749, %v746, %v748
    %759 = vrot.lane.b32.xlu0 %v277, 17
    %v760 = vpop.permute.xlu0 %759
    %761 = vrot.lane.b32.xlu0 %v278, 17
    %v762 = vpop.permute.xlu0 %761
    %763 = vrot.lane.b32.xlu0 %v279, 17
    %v764 = vpop.permute.xlu0 %763
    %765 = vrot.lane.b32.xlu0 %v280, 17
    %v766 = vpop.permute.xlu0 %765
    %767 = vrot.lane.b32.xlu0 %v281, 17
    %v768 = vpop.permute.xlu0 %767
    %769 = vrot.lane.b32.xlu0 %v616, 17
    %v770 = vpop.permute.xlu0 %769
    %771 = vrot.lane.b32.xlu0 %v617, 17
    %v772 = vpop.permute.xlu0 %771
    %773 = vrot.lane.b32.xlu0 %v618, 17
    %v774 = vpop.permute.xlu0 %773
    %775 = vrot.lane.b32.xlu0 %v619, 17
    %v776 = vpop.permute.xlu0 %775
    %777 = vrot.lane.b32.xlu0 %v615, 17
    %v778 = vpop.permute.xlu0 %777
    %779 = vrot.lane.b32.xlu0 %v636, 17
    %v780 = vpop.permute.xlu0 %779
    %781 = vrot.lane.b32.xlu0 %v637, 17
    %v782 = vpop.permute.xlu0 %781
    %783 = vrot.lane.b32.xlu0 %v638, 17
    %v784 = vpop.permute.xlu0 %783
    %785 = vrot.lane.b32.xlu0 %v639, 17
    %v786 = vpop.permute.xlu0 %785
    %787 = vrot.lane.b32.xlu0 %v634, 17
    %v788 = vpop.permute.xlu0 %787
    %789 = vrot.lane.b32.xlu0 %v655, 17
    %v790 = vpop.permute.xlu0 %789
    %791 = vrot.lane.b32.xlu0 %v656, 17
    %v792 = vpop.permute.xlu0 %791
    %793 = vrot.lane.b32.xlu0 %v657, 17
    %v794 = vpop.permute.xlu0 %793
    %795 = vrot.lane.b32.xlu0 %v658, 17
    %v796 = vpop.permute.xlu0 %795
    %797 = vrot.lane.b32.xlu0 %v654, 17
    %v798 = vpop.permute.xlu0 %797
    %799 = vrot.lane.b32.xlu0 %v664, 17
    %v800 = vpop.permute.xlu0 %799
    %801 = vrot.lane.b32.xlu0 %v671, 17
    %v802 = vpop.permute.xlu0 %801
    %803 = vrot.lane.b32.xlu0 %v672, 17
    %v804 = vpop.permute.xlu0 %803
    %805 = vrot.lane.b32.xlu0 %v673, 17
    %v806 = vpop.permute.xlu0 %805
    %807 = vrot.lane.b32.xlu0 %v670, 17
    %v808 = vpop.permute.xlu0 %807
    %809 = vrot.lane.b32.xlu0 %v680, 17
    %v810 = vpop.permute.xlu0 %809
    %811 = vrot.lane.b32.xlu0 %v690, 17
    %v812 = vpop.permute.xlu0 %811
    %813 = vrot.lane.b32.xlu0 %v691, 17
    %v814 = vpop.permute.xlu0 %813
    %815 = vrot.lane.b32.xlu0 %v692, 17
    %v816 = vpop.permute.xlu0 %815
    %817 = vrot.lane.b32.xlu0 %v693, 17
    %v818 = vpop.permute.xlu0 %817
    %819 = vrot.lane.b32.xlu0 %v700, 17
    %v820 = vpop.permute.xlu0 %819
    %821 = vrot.lane.b32.xlu0 %v710, 17
    %v822 = vpop.permute.xlu0 %821
    %823 = vrot.lane.b32.xlu0 %v711, 17
    %v824 = vpop.permute.xlu0 %823
    %825 = vrot.lane.b32.xlu0 %v712, 17
    %v826 = vpop.permute.xlu0 %825
    %827 = vrot.lane.b32.xlu0 %v713, 17
    %v828 = vpop.permute.xlu0 %827
    %829 = vrot.lane.b32.xlu0 %v720, 17
    %v830 = vpop.permute.xlu0 %829
    %831 = vrot.lane.b32.xlu0 %v730, 17
    %v832 = vpop.permute.xlu0 %831
    %833 = vrot.lane.b32.xlu0 %v731, 17
    %v834 = vpop.permute.xlu0 %833
    %835 = vrot.lane.b32.xlu0 %v732, 17
    %v836 = vpop.permute.xlu0 %835
    %837 = vrot.lane.b32.xlu0 %v733, 17
    %v838 = vpop.permute.xlu0 %837
    %839 = vrot.lane.b32.xlu0 %v740, 17
    %v840 = vpop.permute.xlu0 %839
    %841 = vrot.lane.b32.xlu0 %v750, 17
    %v842 = vpop.permute.xlu0 %841
    %843 = vrot.lane.b32.xlu0 %v751, 17
    %v844 = vpop.permute.xlu0 %843
    %845 = vrot.lane.b32.xlu0 %v752, 17
    %v846 = vpop.permute.xlu0 %845
    %847 = vrot.lane.b32.xlu0 %v753, 17
    %v848 = vpop.permute.xlu0 %847
    %v849 = vsel %vm587, %v760, %v762
    %v850 = vsel %vm587, %v762, %v764
    %v851 = vsel %vm587, %v764, %v766
    %v852 = vsel %vm587, %v766, %v768
    %v853 = vsel %vm587, %v770, %v772
    %v854 = vsel %vm587, %v772, %v774
    %v855 = vsel %vm587, %v774, %v776
    %v856 = vsel %vm587, %v776, %v778
    %v857 = vsel %vm587, %v780, %v782
    %v858 = vsel %vm587, %v782, %v784
    %v859 = vsel %vm587, %v784, %v786
    %v860 = vsel %vm587, %v786, %v788
    %v861 = vsel %vm587, %v790, %v792
    %v862 = vsel %vm587, %v792, %v794
    %v863 = vsel %vm587, %v794, %v796
    %v864 = vsel %vm587, %v796, %v798
    %v865 = vsel %vm587, %v800, %v802
    %v866 = vsel %vm587, %v802, %v804
    %v867 = vsel %vm587, %v804, %v806
    %v868 = vsel %vm587, %v806, %v808
    %v869 = vsel %vm587, %v810, %v812
    %v870 = vsel %vm587, %v812, %v814
    %v871 = vsel %vm587, %v814, %v816
    %v872 = vsel %vm587, %v816, %v818
    %v873 = vsel %vm587, %v820, %v822
    %v874 = vsel %vm587, %v822, %v824
    %v875 = vsel %vm587, %v824, %v826
    %v876 = vsel %vm587, %v826, %v828
    %v877 = vsel %vm587, %v830, %v832
    %v878 = vsel %vm587, %v832, %v834
    %v879 = vsel %vm587, %v834, %v836
    %v880 = vsel %vm587, %v836, %v838
    %v881 = vsel %vm587, %v840, %v842
    %v882 = vsel %vm587, %v842, %v844
    %v883 = vsel %vm587, %v844, %v846
    %v884 = vsel %vm587, %v846, %v848
    %vm921 = vcmask 588800
    %v923 = vsel %vm921, %v240, 0
    %925 = vmatprep.subr.mxu0 0.0
    %926 = vmatpush1.msra.mxu0 0.0
    %927 = vmatprep.subr.mxu0 0.0
    %928 = vmatpush1.msra.mxu0 0.0
    %929 = vmatprep.subr.mxu0 0.0
    %930 = vmatpush1.msra.mxu0 0.0
    %931 = vmatprep.subr.mxu0 0.0
    %932 = vmatpush1.msra.mxu0 0.0
    %933 = vmatprep.subr.mxu0 0.0
    %934 = vmatpush1.msra.mxu0 0.0
    %935 = vmatprep.subr.mxu0 0.0
    %936 = vmatpush1.msra.mxu0 0.0
    %937 = vmatprep.subr.mxu0 0.0
    %938 = vmatpush1.msra.mxu0 0.0
    %939 = vmatprep.subr.mxu0 %v882
    %940 = vmatpush1.msra.mxu0 %v881
    %941 = vmatprep.subr.mxu0 %v878
    %942 = vmatpush1.msra.mxu0 %v877
    %943 = vmatprep.subr.mxu0 %v874
    %944 = vmatpush1.msra.mxu0 %v873
    %945 = vmatprep.subr.mxu0 %v870
    %946 = vmatpush1.msra.mxu0 %v869
    %947 = vmatprep.subr.mxu0 %v866
    %948 = vmatpush1.msra.mxu0 %v865
    %949 = vmatprep.subr.mxu0 %v862
    %950 = vmatpush1.msra.mxu0 %v861
    %951 = vmatprep.subr.mxu0 %v858
    %952 = vmatpush1.msra.mxu0 %v857
    %953 = vmatprep.subr.mxu0 %v854
    %954 = vmatpush1.msra.mxu0 %v853
    %955 = vmatprep.subr.mxu0 %v850
    %956 = vmatpush1.msra.mxu0 %v849
    %957 = vmatprep.subr.mxu0 0.0
    %958 = vmatpush2.msra.mxu0 0.0
    %959 = vmatprep.subr.mxu0 0.0
    %960 = vmatpush2.msra.mxu0 0.0
    %961 = vmatprep.subr.mxu0 0.0
    %962 = vmatpush2.msra.mxu0 0.0
    %963 = vmatprep.subr.mxu0 0.0
    %964 = vmatpush2.msra.mxu0 0.0
    %965 = vmatprep.subr.mxu0 0.0
    %966 = vmatpush2.msra.mxu0 0.0
    %967 = vmatprep.subr.mxu0 0.0
    %968 = vmatpush2.msra.mxu0 0.0
    %969 = vmatprep.subr.mxu0 0.0
    %970 = vmatpush2.msra.mxu0 0.0
    %971 = vmatprep.subr.mxu0 0.0
    %972 = vmatpush2.msra.mxu0 0.0
    %973 = vmatprep.subr.mxu0 0.0
    %974 = vmatpush2.msra.mxu0 0.0
    %975 = vmatprep.subr.mxu0 0.0
    %976 = vmatpush2.msra.mxu0 0.0
    %977 = vmatprep.subr.mxu0 0.0
    %978 = vmatpush2.msra.mxu0 0.0
    %979 = vmatprep.subr.mxu0 0.0
    %980 = vmatpush2.msra.mxu0 0.0
    %981 = vmatprep.subr.mxu0 0.0
    %982 = vmatpush2.msra.mxu0 0.0
    %983 = vmatprep.subr.mxu0 0.0
    %984 = vmatpush2.msra.mxu0 0.0
    %985 = vmatprep.subr.mxu0 0.0
    %986 = vmatpush2.msra.mxu0 0.0
    %987 = vmatprep.subr.mxu0 0.0
    %988 = vmatpush2.msra.mxu0 0.0
    %989 = vmatprep.mubr.f32.mxu0 0.0
    %990 = vmatmul.mubr.f32.gmra.mxu0 %v923
    %v991 = vpop.f32.mrf.mxu0
    %v992 = vadd.f32 0.0, %v991
    %v993 = vpop.f32.mrf.mxu0
    %v994 = vadd.f32 0.0, %v993
    %995 = vdwg.mxu0
    %996 = vmatprep.subr.mxu0 0.0
    %997 = vmatpush1.msra.mxu0 0.0
    %998 = vmatprep.subr.mxu0 0.0
    %999 = vmatpush1.msra.mxu0 0.0
    %1000 = vmatprep.subr.mxu0 0.0
    %1001 = vmatpush1.msra.mxu0 0.0
    %1002 = vmatprep.subr.mxu0 0.0
    %1003 = vmatpush1.msra.mxu0 0.0
    %1004 = vmatprep.subr.mxu0 0.0
    %1005 = vmatpush1.msra.mxu0 0.0
    %1006 = vmatprep.subr.mxu0 0.0
    %1007 = vmatpush1.msra.mxu0 0.0
    %1008 = vmatprep.subr.mxu0 0.0
    %1009 = vmatpush1.msra.mxu0 0.0
    %1010 = vmatprep.subr.mxu0 %v884
    %1011 = vmatpush1.msra.mxu0 %v883
    %1012 = vmatprep.subr.mxu0 %v880
    %1013 = vmatpush1.msra.mxu0 %v879
    %1014 = vmatprep.subr.mxu0 %v876
    %1015 = vmatpush1.msra.mxu0 %v875
    %1016 = vmatprep.subr.mxu0 %v872
    %1017 = vmatpush1.msra.mxu0 %v871
    %1018 = vmatprep.subr.mxu0 %v868
    %1019 = vmatpush1.msra.mxu0 %v867
    %1020 = vmatprep.subr.mxu0 %v864
    %1021 = vmatpush1.msra.mxu0 %v863
    %1022 = vmatprep.subr.mxu0 %v860
    %1023 = vmatpush1.msra.mxu0 %v859
    %1024 = vmatprep.subr.mxu0 %v856
    %1025 = vmatpush1.msra.mxu0 %v855
    %1026 = vmatprep.subr.mxu0 %v852
    %1027 = vmatpush1.msra.mxu0 %v851
    %1028 = vmatprep.subr.mxu0 0.0
    %1029 = vmatpush2.msra.mxu0 0.0
    %1030 = vmatprep.subr.mxu0 0.0
    %1031 = vmatpush2.msra.mxu0 0.0
    %1032 = vmatprep.subr.mxu0 0.0
    %1033 = vmatpush2.msra.mxu0 0.0
    %1034 = vmatprep.subr.mxu0 0.0
    %1035 = vmatpush2.msra.mxu0 0.0
    %1036 = vmatprep.subr.mxu0 0.0
    %1037 = vmatpush2.msra.mxu0 0.0
    %1038 = vmatprep.subr.mxu0 0.0
    %1039 = vmatpush2.msra.mxu0 0.0
    %1040 = vmatprep.subr.mxu0 0.0
    %1041 = vmatpush2.msra.mxu0 0.0
    %1042 = vmatprep.subr.mxu0 0.0
    %1043 = vmatpush2.msra.mxu0 0.0
    %1044 = vmatprep.subr.mxu0 0.0
    %1045 = vmatpush2.msra.mxu0 0.0
    %1046 = vmatprep.subr.mxu0 0.0
    %1047 = vmatpush2.msra.mxu0 0.0
    %1048 = vmatprep.subr.mxu0 0.0
    %1049 = vmatpush2.msra.mxu0 0.0
    %1050 = vmatprep.subr.mxu0 0.0
    %1051 = vmatpush2.msra.mxu0 0.0
    %1052 = vmatprep.subr.mxu0 0.0
    %1053 = vmatpush2.msra.mxu0 0.0
    %1054 = vmatprep.subr.mxu0 0.0
    %1055 = vmatpush2.msra.mxu0 0.0
    %1056 = vmatprep.subr.mxu0 0.0
    %1057 = vmatpush2.msra.mxu0 0.0
    %1058 = vmatprep.subr.mxu0 0.0
    %1059 = vmatpush2.msra.mxu0 0.0
    %1060 = vmatprep.mubr.f32.mxu0 0.0
    %1061 = vmatmul.mubr.f32.gmra.mxu0 %v923
    %v1062 = vpop.f32.mrf.mxu0
    %v1063 = vadd.f32 0.0, %v1062
    %v1064 = vpop.f32.mrf.mxu0
    %v1065 = vadd.f32 0.0, %v1064
    %1066 = vdwg.mxu0
    %v1067 = vld [vmem:[%s4] sm:$0xff]
    %v1068 = vld [vmem:[%s5] sm:$0xff]
    %v1069 = vadd.f32 %v992, %v994
    %v1070 = vadd.f32 %v1069, %v1063
    %v1071 = vadd.f32 %v1070, %v1065
    %1072 = vadd.xlane.f32.xlu0 %v1071
    %v1073 = vpop.xlane.xlu0 %1072
    %v1074 = vmul.f32 %v1073, 0.001953125
    %v1075 = vmul.f32 %v992, %v992
    %v1076 = vmul.f32 %v994, %v994
    %v1077 = vmul.f32 %v1063, %v1063
    %v1078 = vmul.f32 %v1065, %v1065
    %v1079 = vadd.f32 %v1075, %v1076
    %v1080 = vadd.f32 %v1079, %v1077
    %v1081 = vadd.f32 %v1080, %v1078
    %1082 = vadd.xlane.f32.xlu0 %v1081
    %v1083 = vpop.xlane.xlu0 %1082
    %v1084 = vmul.f32 %v1083, 0.001953125
    %v1085 = vmul.f32 %v1074, %v1074
    %v1086 = vsub.f32 %v1084, %v1085
    %v1087 = vmax.f32 %v1086, 0.0
    %v1088 = vadd.f32 %v1087, 1e-05
    %v1089 = vrsqrt.pop %v1088
    %v1090 = vmul.f32 %v1067, %v1089
    %1092 = vset.pattern.permute.xlu0 0
    %1093 = vperm.xlu0 %1092, %v1090
    %v1094 = vpop.permute.xlu0 %1093
    %v1096 = vmul.f32 %v992, %v1094
    %v1097 = vmul.f32 %v994, %v1094
    %v1098 = vmul.f32 %v1063, %v1094
    %v1099 = vmul.f32 %v1065, %v1094
    %v1100 = vmul.f32 %v1074, %v1090
    %v1101 = vsub.f32 %v1068, %v1100
    %1103 = vset.pattern.permute.xlu0 0
    %1104 = vperm.xlu0 %1103, %v1101
    %v1105 = vpop.permute.xlu0 %1104
    %v1107 = vadd.f32 %v1096, %v1105
    %v1108 = vadd.f32 %v1097, %v1105
    %v1109 = vadd.f32 %v1098, %v1105
    %v1110 = vadd.f32 %v1099, %v1105
    %v1111 = vmax.f32 %v1107, 0.0
    %v1112 = vmax.f32 %v1108, 0.0
    %v1113 = vmax.f32 %v1109, 0.0
    %v1114 = vmax.f32 %v1110, 0.0
    %1115 = vst [vmem:[#allocation2 + $0x8] sm:$0xff] %v1111
    %1116 = vst [vmem:[#allocation2 + $0x10] sm:$0xff] %v1112
    %1117 = vst [vmem:[#allocation2 + $0x18] sm:$0xff] %v1113
    %1118 = vst [vmem:[#allocation2 + $0x20] sm:$0xff] %v1114
    %v1119 = vld [vmem:[#allocation6] sm:$0xff]
    %v1120 = vld [vmem:[#allocation2] sm:$0xff]
    %v1121 = vld [vmem:[#allocation2 + $0x8] sm:$0xff]
    %v1122 = vld [vmem:[#allocation2 + $0x10] sm:$0xff]
    %v1123 = vld [vmem:[#allocation2 + $0x18] sm:$0xff]
    %v1124 = vld [vmem:[#allocation2 + $0x20] sm:$0xff]
    %v1125 = vld [vmem:[%s8] sm:$0xf]
    %v1127 = vlaneseq
    %v1128 = vshrl.u32 %v1127, 7
    %v1129 = vsub.s32 0, %v1128
    %v1130 = vrot.slane %v1125, %v1129
    %v1131 = vlaneseq
    %v1132 = vshrl.u32 %v1131, 7
    %v1133 = vsub.s32 1, %v1132
    %v1134 = vrot.slane %v1125, %v1133
    %v1135 = vlaneseq
    %v1136 = vshrl.u32 %v1135, 7
    %v1137 = vsub.s32 2, %v1136
    %v1138 = vrot.slane %v1125, %v1137
    %v1139 = vlaneseq
    %v1140 = vshrl.u32 %v1139, 7
    %v1141 = vsub.s32 3, %v1140
    %v1142 = vrot.slane %v1125, %v1141
    %1143 = vrot.lane.b32.xlu0 %v1130, 111
    %v1144 = vpop.permute.xlu0 %1143
    %1145 = vrot.lane.b32.xlu0 %v1134, 111
    %v1146 = vpop.permute.xlu0 %1145
    %1147 = vrot.lane.b32.xlu0 %v1138, 111
    %v1148 = vpop.permute.xlu0 %1147
    %1149 = vrot.lane.b32.xlu0 %v1142, 111
    %v1150 = vpop.permute.xlu0 %1149
    %v1151 = vsel %vm268, %v1144, %v1146
    %v1152 = vsel %vm268, %v1146, %v1148
    %v1153 = vsel %vm268, %v1148, %v1150
    %v1159 = vmul.f32 %v1120, %v1144
    %v1160 = vmul.f32 %v1121, %v1151
    %v1161 = vmul.f32 %v1122, %v1152
    %v1162 = vmul.f32 %v1123, %v1153
    %v1163 = vmul.f32 %v1124, %v1150
    %v1164 = vld [vmem:[%s282] sm:$0xf]
    %v1166 = vlaneseq
    %v1167 = vshrl.u32 %v1166, 7
    %v1168 = vsub.s32 0, %v1167
    %v1169 = vrot.slane %v1164, %v1168
    %v1170 = vlaneseq
    %v1171 = vshrl.u32 %v1170, 7
    %v1172 = vsub.s32 1, %v1171
    %v1173 = vrot.slane %v1164, %v1172
    %v1174 = vlaneseq
    %v1175 = vshrl.u32 %v1174, 7
    %v1176 = vsub.s32 2, %v1175
    %v1177 = vrot.slane %v1164, %v1176
    %v1178 = vlaneseq
    %v1179 = vshrl.u32 %v1178, 7
    %v1180 = vsub.s32 3, %v1179
    %v1181 = vrot.slane %v1164, %v1180
    %1182 = vrot.lane.b32.xlu0 %v1169, 112
    %v1183 = vpop.permute.xlu0 %1182
    %1184 = vrot.lane.b32.xlu0 %v1173, 112
    %v1185 = vpop.permute.xlu0 %1184
    %1186 = vrot.lane.b32.xlu0 %v1177, 112
    %v1187 = vpop.permute.xlu0 %1186
    %1188 = vrot.lane.b32.xlu0 %v1181, 112
    %v1189 = vpop.permute.xlu0 %1188
    %v1190 = vsel %vm309, %v1183, %v1185
    %v1191 = vsel %vm309, %v1185, %v1187
    %v1192 = vsel %vm309, %v1187, %v1189
    %v1198 = vmul.f32 %v1120, %v1183
    %v1199 = vmul.f32 %v1121, %v1190
    %v1200 = vmul.f32 %v1122, %v1191
    %v1201 = vmul.f32 %v1123, %v1192
    %v1202 = vmul.f32 %v1124, %v1189
    %v1203 = vld [vmem:[%s323] sm:$0xf]
    %v1205 = vlaneseq
    %v1206 = vshrl.u32 %v1205, 7
    %v1207 = vsub.s32 0, %v1206
    %v1208 = vrot.slane %v1203, %v1207
    %v1209 = vlaneseq
    %v1210 = vshrl.u32 %v1209, 7
    %v1211 = vsub.s32 1, %v1210
    %v1212 = vrot.slane %v1203, %v1211
    %v1213 = vlaneseq
    %v1214 = vshrl.u32 %v1213, 7
    %v1215 = vsub.s32 2, %v1214
    %v1216 = vrot.slane %v1203, %v1215
    %v1217 = vlaneseq
    %v1218 = vshrl.u32 %v1217, 7
    %v1219 = vsub.s32 3, %v1218
    %v1220 = vrot.slane %v1203, %v1219
    %1221 = vrot.lane.b32.xlu0 %v1208, 113
    %v1222 = vpop.permute.xlu0 %1221
    %1223 = vrot.lane.b32.xlu0 %v1212, 113
    %v1224 = vpop.permute.xlu0 %1223
    %1225 = vrot.lane.b32.xlu0 %v1216, 113
    %v1226 = vpop.permute.xlu0 %1225
    %1227 = vrot.lane.b32.xlu0 %v1220, 113
    %v1228 = vpop.permute.xlu0 %1227
    %v1229 = vsel %vm350, %v1222, %v1224
    %v1230 = vsel %vm350, %v1224, %v1226
    %v1231 = vsel %vm350, %v1226, %v1228
    %v1237 = vmul.f32 %v1120, %v1222
    %v1238 = vmul.f32 %v1121, %v1229
    %v1239 = vmul.f32 %v1122, %v1230
    %v1240 = vmul.f32 %v1123, %v1231
    %v1241 = vmul.f32 %v1124, %v1228
    %v1242 = vld [vmem:[%s364] sm:$0xf]
    %v1244 = vlaneseq
    %v1245 = vshrl.u32 %v1244, 7
    %v1246 = vsub.s32 0, %v1245
    %v1247 = vrot.slane %v1242, %v1246
    %v1248 = vlaneseq
    %v1249 = vshrl.u32 %v1248, 7
    %v1250 = vsub.s32 1, %v1249
    %v1251 = vrot.slane %v1242, %v1250
    %v1252 = vlaneseq
    %v1253 = vshrl.u32 %v1252, 7
    %v1254 = vsub.s32 2, %v1253
    %v1255 = vrot.slane %v1242, %v1254
    %v1256 = vlaneseq
    %v1257 = vshrl.u32 %v1256, 7
    %v1258 = vsub.s32 3, %v1257
    %v1259 = vrot.slane %v1242, %v1258
    %1260 = vrot.lane.b32.xlu0 %v1247, 127
    %v1261 = vpop.permute.xlu0 %1260
    %1262 = vrot.lane.b32.xlu0 %v1251, 127
    %v1263 = vpop.permute.xlu0 %1262
    %1264 = vrot.lane.b32.xlu0 %v1255, 127
    %v1265 = vpop.permute.xlu0 %1264
    %1266 = vrot.lane.b32.xlu0 %v1259, 127
    %v1267 = vpop.permute.xlu0 %1266
    %v1268 = vsel %vm391, %v1261, %v1263
    %v1269 = vsel %vm391, %v1263, %v1265
    %v1270 = vsel %vm391, %v1265, %v1267
    %v1276 = vmul.f32 %v1120, %v1261
    %v1277 = vmul.f32 %v1121, %v1268
    %v1278 = vmul.f32 %v1122, %v1269
    %v1279 = vmul.f32 %v1123, %v1270
    %v1280 = vmul.f32 %v1124, %v1267
    %v1281 = vld [vmem:[%s405] sm:$0xf]
    %v1283 = vlaneseq
    %v1284 = vshrl.u32 %v1283, 7
    %v1285 = vsub.s32 0, %v1284
    %v1286 = vrot.slane %v1281, %v1285
    %v1287 = vlaneseq
    %v1288 = vshrl.u32 %v1287, 7
    %v1289 = vsub.s32 1, %v1288
    %v1290 = vrot.slane %v1281, %v1289
    %v1291 = vlaneseq
    %v1292 = vshrl.u32 %v1291, 7
    %v1293 = vsub.s32 2, %v1292
    %v1294 = vrot.slane %v1281, %v1293
    %v1295 = vlaneseq
    %v1296 = vshrl.u32 %v1295, 7
    %v1297 = vsub.s32 3, %v1296
    %v1298 = vrot.slane %v1281, %v1297
    %v1303 = vmul.f32 %v1121, %v1286
    %v1304 = vmul.f32 %v1122, %v1290
    %v1305 = vmul.f32 %v1123, %v1294
    %v1306 = vmul.f32 %v1124, %v1298
    %v1307 = vld [vmem:[#allocation2 + $0x8] sm:$0xff]
    %v1308 = vld [vmem:[#allocation2 + $0x10] sm:$0xff]
    %v1309 = vld [vmem:[#allocation2 + $0x18] sm:$0xff]
    %v1310 = vld [vmem:[#allocation2 + $0x20] sm:$0xff]
    %v1311 = vld [vmem:[#allocation2 + $0x28] sm:$0xff]
    %v1312 = vld [vmem:[%s437] sm:$0xf]
    %v1314 = vlaneseq
    %v1315 = vshrl.u32 %v1314, 7
    %v1316 = vsub.s32 0, %v1315
    %v1317 = vrot.slane %v1312, %v1316
    %v1318 = vlaneseq
    %v1319 = vshrl.u32 %v1318, 7
    %v1320 = vsub.s32 1, %v1319
    %v1321 = vrot.slane %v1312, %v1320
    %v1322 = vlaneseq
    %v1323 = vshrl.u32 %v1322, 7
    %v1324 = vsub.s32 2, %v1323
    %v1325 = vrot.slane %v1312, %v1324
    %v1326 = vlaneseq
    %v1327 = vshrl.u32 %v1326, 7
    %v1328 = vsub.s32 3, %v1327
    %v1329 = vrot.slane %v1312, %v1328
    %1330 = vrot.lane.b32.xlu0 %v1317, 1
    %v1331 = vpop.permute.xlu0 %1330
    %1332 = vrot.lane.b32.xlu0 %v1321, 1
    %v1333 = vpop.permute.xlu0 %1332
    %1334 = vrot.lane.b32.xlu0 %v1325, 1
    %v1335 = vpop.permute.xlu0 %1334
    %1336 = vrot.lane.b32.xlu0 %v1329, 1
    %v1337 = vpop.permute.xlu0 %1336
    %v1338 = vsel %vm464, %v1331, %v1333
    %v1339 = vsel %vm464, %v1333, %v1335
    %v1340 = vsel %vm464, %v1335, %v1337
    %v1346 = vmul.f32 %v1307, %v1331
    %v1347 = vmul.f32 %v1308, %v1338
    %v1348 = vmul.f32 %v1309, %v1339
    %v1349 = vmul.f32 %v1310, %v1340
    %v1350 = vmul.f32 %v1311, %v1337
    %v1351 = vld [vmem:[%s478] sm:$0xf]
    %v1353 = vlaneseq
    %v1354 = vshrl.u32 %v1353, 7
    %v1355 = vsub.s32 0, %v1354
    %v1356 = vrot.slane %v1351, %v1355
    %v1357 = vlaneseq
    %v1358 = vshrl.u32 %v1357, 7
    %v1359 = vsub.s32 1, %v1358
    %v1360 = vrot.slane %v1351, %v1359
    %v1361 = vlaneseq
    %v1362 = vshrl.u32 %v1361, 7
    %v1363 = vsub.s32 2, %v1362
    %v1364 = vrot.slane %v1351, %v1363
    %v1365 = vlaneseq
    %v1366 = vshrl.u32 %v1365, 7
    %v1367 = vsub.s32 3, %v1366
    %v1368 = vrot.slane %v1351, %v1367
    %1369 = vrot.lane.b32.xlu0 %v1356, 15
    %v1370 = vpop.permute.xlu0 %1369
    %1371 = vrot.lane.b32.xlu0 %v1360, 15
    %v1372 = vpop.permute.xlu0 %1371
    %1373 = vrot.lane.b32.xlu0 %v1364, 15
    %v1374 = vpop.permute.xlu0 %1373
    %1375 = vrot.lane.b32.xlu0 %v1368, 15
    %v1376 = vpop.permute.xlu0 %1375
    %v1377 = vsel %vm505, %v1370, %v1372
    %v1378 = vsel %vm505, %v1372, %v1374
    %v1379 = vsel %vm505, %v1374, %v1376
    %v1385 = vmul.f32 %v1307, %v1370
    %v1386 = vmul.f32 %v1308, %v1377
    %v1387 = vmul.f32 %v1309, %v1378
    %v1388 = vmul.f32 %v1310, %v1379
    %v1389 = vmul.f32 %v1311, %v1376
    %v1390 = vld [vmem:[%s519] sm:$0xf]
    %v1392 = vlaneseq
    %v1393 = vshrl.u32 %v1392, 7
    %v1394 = vsub.s32 0, %v1393
    %v1395 = vrot.slane %v1390, %v1394
    %v1396 = vlaneseq
    %v1397 = vshrl.u32 %v1396, 7
    %v1398 = vsub.s32 1, %v1397
    %v1399 = vrot.slane %v1390, %v1398
    %v1400 = vlaneseq
    %v1401 = vshrl.u32 %v1400, 7
    %v1402 = vsub.s32 2, %v1401
    %v1403 = vrot.slane %v1390, %v1402
    %v1404 = vlaneseq
    %v1405 = vshrl.u32 %v1404, 7
    %v1406 = vsub.s32 3, %v1405
    %v1407 = vrot.slane %v1390, %v1406
    %1408 = vrot.lane.b32.xlu0 %v1395, 16
    %v1409 = vpop.permute.xlu0 %1408
    %1410 = vrot.lane.b32.xlu0 %v1399, 16
    %v1411 = vpop.permute.xlu0 %1410
    %1412 = vrot.lane.b32.xlu0 %v1403, 16
    %v1413 = vpop.permute.xlu0 %1412
    %1414 = vrot.lane.b32.xlu0 %v1407, 16
    %v1415 = vpop.permute.xlu0 %1414
    %v1416 = vsel %vm546, %v1409, %v1411
    %v1417 = vsel %vm546, %v1411, %v1413
    %v1418 = vsel %vm546, %v1413, %v1415
    %v1424 = vmul.f32 %v1307, %v1409
    %v1425 = vmul.f32 %v1308, %v1416
    %v1426 = vmul.f32 %v1309, %v1417
    %v1427 = vmul.f32 %v1310, %v1418
    %v1428 = vmul.f32 %v1311, %v1415
    %v1429 = vld [vmem:[%s560] sm:$0xf]
    %v1431 = vlaneseq
    %v1432 = vshrl.u32 %v1431, 7
    %v1433 = vsub.s32 0, %v1432
    %v1434 = vrot.slane %v1429, %v1433
    %v1435 = vlaneseq
    %v1436 = vshrl.u32 %v1435, 7
    %v1437 = vsub.s32 1, %v1436
    %v1438 = vrot.slane %v1429, %v1437
    %v1439 = vlaneseq
    %v1440 = vshrl.u32 %v1439, 7
    %v1441 = vsub.s32 2, %v1440
    %v1442 = vrot.slane %v1429, %v1441
    %v1443 = vlaneseq
    %v1444 = vshrl.u32 %v1443, 7
    %v1445 = vsub.s32 3, %v1444
    %v1446 = vrot.slane %v1429, %v1445
    %1447 = vrot.lane.b32.xlu0 %v1434, 17
    %v1448 = vpop.permute.xlu0 %1447
    %1449 = vrot.lane.b32.xlu0 %v1438, 17
    %v1450 = vpop.permute.xlu0 %1449
    %1451 = vrot.lane.b32.xlu0 %v1442, 17
    %v1452 = vpop.permute.xlu0 %1451
    %1453 = vrot.lane.b32.xlu0 %v1446, 17
    %v1454 = vpop.permute.xlu0 %1453
    %v1455 = vsel %vm587, %v1448, %v1450
    %v1456 = vsel %vm587, %v1450, %v1452
    %v1457 = vsel %vm587, %v1452, %v1454
    %v1463 = vmul.f32 %v1307, %v1448
    %v1464 = vmul.f32 %v1308, %v1455
    %v1465 = vmul.f32 %v1309, %v1456
    %v1466 = vmul.f32 %v1310, %v1457
    %v1467 = vmul.f32 %v1311, %v1454
    %1473 = vrot.lane.b32.xlu0 %v1198, 127
    %v1474 = vpop.permute.xlu0 %1473
    %1475 = vrot.lane.b32.xlu0 %v1199, 127
    %v1476 = vpop.permute.xlu0 %1475
    %1477 = vrot.lane.b32.xlu0 %v1200, 127
    %v1478 = vpop.permute.xlu0 %1477
    %1479 = vrot.lane.b32.xlu0 %v1201, 127
    %v1480 = vpop.permute.xlu0 %1479
    %1481 = vrot.lane.b32.xlu0 %v1202, 127
    %v1482 = vpop.permute.xlu0 %1481
    %v1483 = vsel %vm391, %v1474, %v1476
    %v1484 = vsel %vm391, %v1476, %v1478
    %v1485 = vsel %vm391, %v1478, %v1480
    %v1486 = vsel %vm391, %v1480, %v1482
    %1492 = vrot.lane.b32.xlu0 %v1237, 126
    %v1493 = vpop.permute.xlu0 %1492
    %1494 = vrot.lane.b32.xlu0 %v1238, 126
    %v1495 = vpop.permute.xlu0 %1494
    %1496 = vrot.lane.b32.xlu0 %v1239, 126
    %v1497 = vpop.permute.xlu0 %1496
    %1498 = vrot.lane.b32.xlu0 %v1240, 126
    %v1499 = vpop.permute.xlu0 %1498
    %1500 = vrot.lane.b32.xlu0 %v1241, 126
    %v1501 = vpop.permute.xlu0 %1500
    %v1502 = vsel %vm635, %v1493, %v1495
    %v1503 = vsel %vm635, %v1495, %v1497
    %v1504 = vsel %vm635, %v1497, %v1499
    %v1505 = vsel %vm635, %v1499, %v1501
    %1511 = vrot.lane.b32.xlu0 %v1276, 112
    %v1512 = vpop.permute.xlu0 %1511
    %1513 = vrot.lane.b32.xlu0 %v1277, 112
    %v1514 = vpop.permute.xlu0 %1513
    %1515 = vrot.lane.b32.xlu0 %v1278, 112
    %v1516 = vpop.permute.xlu0 %1515
    %1517 = vrot.lane.b32.xlu0 %v1279, 112
    %v1518 = vpop.permute.xlu0 %1517
    %1519 = vrot.lane.b32.xlu0 %v1280, 112
    %v1520 = vpop.permute.xlu0 %1519
    %v1521 = vsel %vm309, %v1512, %v1514
    %v1522 = vsel %vm309, %v1514, %v1516
    %v1523 = vsel %vm309, %v1516, %v1518
    %v1524 = vsel %vm309, %v1518, %v1520
    %1529 = vrot.lane.b32.xlu0 %v1303, 111
    %v1530 = vpop.permute.xlu0 %1529
    %1531 = vrot.lane.b32.xlu0 %v1304, 111
    %v1532 = vpop.permute.xlu0 %1531
    %1533 = vrot.lane.b32.xlu0 %v1305, 111
    %v1534 = vpop.permute.xlu0 %1533
    %1535 = vrot.lane.b32.xlu0 %v1306, 111
    %v1536 = vpop.permute.xlu0 %1535
    %v1537 = vsel %vm268, %v1530, %v1532
    %v1538 = vsel %vm268, %v1532, %v1534
    %v1539 = vsel %vm268, %v1534, %v1536
    %1545 = vrot.lane.b32.xlu0 %v1346, 110
    %v1546 = vpop.permute.xlu0 %1545
    %1547 = vrot.lane.b32.xlu0 %v1347, 110
    %v1548 = vpop.permute.xlu0 %1547
    %1549 = vrot.lane.b32.xlu0 %v1348, 110
    %v1550 = vpop.permute.xlu0 %1549
    %1551 = vrot.lane.b32.xlu0 %v1349, 110
    %v1552 = vpop.permute.xlu0 %1551
    %1553 = vrot.lane.b32.xlu0 %v1350, 110
    %v1554 = vpop.permute.xlu0 %1553
    %v1555 = vsel %vm689, %v1546, %v1548
    %v1556 = vsel %vm689, %v1548, %v1550
    %v1557 = vsel %vm689, %v1550, %v1552
    %v1558 = vsel %vm689, %v1552, %v1554
    %1564 = vrot.lane.b32.xlu0 %v1385, 96
    %v1565 = vpop.permute.xlu0 %1564
    %1566 = vrot.lane.b32.xlu0 %v1386, 96
    %v1567 = vpop.permute.xlu0 %1566
    %1568 = vrot.lane.b32.xlu0 %v1387, 96
    %v1569 = vpop.permute.xlu0 %1568
    %1570 = vrot.lane.b32.xlu0 %v1388, 96
    %v1571 = vpop.permute.xlu0 %1570
    %1572 = vrot.lane.b32.xlu0 %v1389, 96
    %v1573 = vpop.permute.xlu0 %1572
    %v1574 = vsel %vm709, %v1565, %v1567
    %v1575 = vsel %vm709, %v1567, %v1569
    %v1576 = vsel %vm709, %v1569, %v1571
    %v1577 = vsel %vm709, %v1571, %v1573
    %1583 = vrot.lane.b32.xlu0 %v1424, 95
    %v1584 = vpop.permute.xlu0 %1583
    %1585 = vrot.lane.b32.xlu0 %v1425, 95
    %v1586 = vpop.permute.xlu0 %1585
    %1587 = vrot.lane.b32.xlu0 %v1426, 95
    %v1588 = vpop.permute.xlu0 %1587
    %1589 = vrot.lane.b32.xlu0 %v1427, 95
    %v1590 = vpop.permute.xlu0 %1589
    %1591 = vrot.lane.b32.xlu0 %v1428, 95
    %v1592 = vpop.permute.xlu0 %1591
    %v1593 = vsel %vm729, %v1584, %v1586
    %v1594 = vsel %vm729, %v1586, %v1588
    %v1595 = vsel %vm729, %v1588, %v1590
    %v1596 = vsel %vm729, %v1590, %v1592
    %1602 = vrot.lane.b32.xlu0 %v1463, 94
    %v1603 = vpop.permute.xlu0 %1602
    %1604 = vrot.lane.b32.xlu0 %v1464, 94
    %v1605 = vpop.permute.xlu0 %1604
    %1606 = vrot.lane.b32.xlu0 %v1465, 94
    %v1607 = vpop.permute.xlu0 %1606
    %1608 = vrot.lane.b32.xlu0 %v1466, 94
    %v1609 = vpop.permute.xlu0 %1608
    %1610 = vrot.lane.b32.xlu0 %v1467, 94
    %v1611 = vpop.permute.xlu0 %1610
    %v1612 = vsel %vm749, %v1603, %v1605
    %v1613 = vsel %vm749, %v1605, %v1607
    %v1614 = vsel %vm749, %v1607, %v1609
    %v1615 = vsel %vm749, %v1609, %v1611
    %1621 = vrot.lane.b32.xlu0 %v1159, 17
    %v1622 = vpop.permute.xlu0 %1621
    %1623 = vrot.lane.b32.xlu0 %v1160, 17
    %v1624 = vpop.permute.xlu0 %1623
    %1625 = vrot.lane.b32.xlu0 %v1161, 17
    %v1626 = vpop.permute.xlu0 %1625
    %1627 = vrot.lane.b32.xlu0 %v1162, 17
    %v1628 = vpop.permute.xlu0 %1627
    %1629 = vrot.lane.b32.xlu0 %v1163, 17
    %v1630 = vpop.permute.xlu0 %1629
    %1631 = vrot.lane.b32.xlu0 %v1483, 17
    %v1632 = vpop.permute.xlu0 %1631
    %1633 = vrot.lane.b32.xlu0 %v1484, 17
    %v1634 = vpop.permute.xlu0 %1633
    %1635 = vrot.lane.b32.xlu0 %v1485, 17
    %v1636 = vpop.permute.xlu0 %1635
    %1637 = vrot.lane.b32.xlu0 %v1486, 17
    %v1638 = vpop.permute.xlu0 %1637
    %1639 = vrot.lane.b32.xlu0 %v1482, 17
    %v1640 = vpop.permute.xlu0 %1639
    %1641 = vrot.lane.b32.xlu0 %v1502, 17
    %v1642 = vpop.permute.xlu0 %1641
    %1643 = vrot.lane.b32.xlu0 %v1503, 17
    %v1644 = vpop.permute.xlu0 %1643
    %1645 = vrot.lane.b32.xlu0 %v1504, 17
    %v1646 = vpop.permute.xlu0 %1645
    %1647 = vrot.lane.b32.xlu0 %v1505, 17
    %v1648 = vpop.permute.xlu0 %1647
    %1649 = vrot.lane.b32.xlu0 %v1501, 17
    %v1650 = vpop.permute.xlu0 %1649
    %1651 = vrot.lane.b32.xlu0 %v1521, 17
    %v1652 = vpop.permute.xlu0 %1651
    %1653 = vrot.lane.b32.xlu0 %v1522, 17
    %v1654 = vpop.permute.xlu0 %1653
    %1655 = vrot.lane.b32.xlu0 %v1523, 17
    %v1656 = vpop.permute.xlu0 %1655
    %1657 = vrot.lane.b32.xlu0 %v1524, 17
    %v1658 = vpop.permute.xlu0 %1657
    %1659 = vrot.lane.b32.xlu0 %v1520, 17
    %v1660 = vpop.permute.xlu0 %1659
    %1661 = vrot.lane.b32.xlu0 %v1530, 17
    %v1662 = vpop.permute.xlu0 %1661
    %1663 = vrot.lane.b32.xlu0 %v1537, 17
    %v1664 = vpop.permute.xlu0 %1663
    %1665 = vrot.lane.b32.xlu0 %v1538, 17
    %v1666 = vpop.permute.xlu0 %1665
    %1667 = vrot.lane.b32.xlu0 %v1539, 17
    %v1668 = vpop.permute.xlu0 %1667
    %1669 = vrot.lane.b32.xlu0 %v1536, 17
    %v1670 = vpop.permute.xlu0 %1669
    %1671 = vrot.lane.b32.xlu0 %v1546, 17
    %v1672 = vpop.permute.xlu0 %1671
    %1673 = vrot.lane.b32.xlu0 %v1555, 17
    %v1674 = vpop.permute.xlu0 %1673
    %1675 = vrot.lane.b32.xlu0 %v1556, 17
    %v1676 = vpop.permute.xlu0 %1675
    %1677 = vrot.lane.b32.xlu0 %v1557, 17
    %v1678 = vpop.permute.xlu0 %1677
    %1679 = vrot.lane.b32.xlu0 %v1558, 17
    %v1680 = vpop.permute.xlu0 %1679
    %1681 = vrot.lane.b32.xlu0 %v1565, 17
    %v1682 = vpop.permute.xlu0 %1681
    %1683 = vrot.lane.b32.xlu0 %v1574, 17
    %v1684 = vpop.permute.xlu0 %1683
    %1685 = vrot.lane.b32.xlu0 %v1575, 17
    %v1686 = vpop.permute.xlu0 %1685
    %1687 = vrot.lane.b32.xlu0 %v1576, 17
    %v1688 = vpop.permute.xlu0 %1687
    %1689 = vrot.lane.b32.xlu0 %v1577, 17
    %v1690 = vpop.permute.xlu0 %1689
    %1691 = vrot.lane.b32.xlu0 %v1584, 17
    %v1692 = vpop.permute.xlu0 %1691
    %1693 = vrot.lane.b32.xlu0 %v1593, 17
    %v1694 = vpop.permute.xlu0 %1693
    %1695 = vrot.lane.b32.xlu0 %v1594, 17
    %v1696 = vpop.permute.xlu0 %1695
    %1697 = vrot.lane.b32.xlu0 %v1595, 17
    %v1698 = vpop.permute.xlu0 %1697
    %1699 = vrot.lane.b32.xlu0 %v1596, 17
    %v1700 = vpop.permute.xlu0 %1699
    %1701 = vrot.lane.b32.xlu0 %v1603, 17
    %v1702 = vpop.permute.xlu0 %1701
    %1703 = vrot.lane.b32.xlu0 %v1612, 17
    %v1704 = vpop.permute.xlu0 %1703
    %1705 = vrot.lane.b32.xlu0 %v1613, 17
    %v1706 = vpop.permute.xlu0 %1705
    %1707 = vrot.lane.b32.xlu0 %v1614, 17
    %v1708 = vpop.permute.xlu0 %1707
    %1709 = vrot.lane.b32.xlu0 %v1615, 17
    %v1710 = vpop.permute.xlu0 %1709
    %v1711 = vsel %vm587, %v1622, %v1624
    %v1712 = vsel %vm587, %v1624, %v1626
    %v1713 = vsel %vm587, %v1626, %v1628
    %v1714 = vsel %vm587, %v1628, %v1630
    %v1715 = vsel %vm587, %v1632, %v1634
    %v1716 = vsel %vm587, %v1634, %v1636
    %v1717 = vsel %vm587, %v1636, %v1638
    %v1718 = vsel %vm587, %v1638, %v1640
    %v1719 = vsel %vm587, %v1642, %v1644
    %v1720 = vsel %vm587, %v1644, %v1646
    %v1721 = vsel %vm587, %v1646, %v1648
    %v1722 = vsel %vm587, %v1648, %v1650
    %v1723 = vsel %vm587, %v1652, %v1654
    %v1724 = vsel %vm587, %v1654, %v1656
    %v1725 = vsel %vm587, %v1656, %v1658
    %v1726 = vsel %vm587, %v1658, %v1660
    %v1727 = vsel %vm587, %v1662, %v1664
    %v1728 = vsel %vm587, %v1664, %v1666
    %v1729 = vsel %vm587, %v1666, %v1668
    %v1730 = vsel %vm587, %v1668, %v1670
    %v1731 = vsel %vm587, %v1672, %v1674
    %v1732 = vsel %vm587, %v1674, %v1676
    %v1733 = vsel %vm587, %v1676, %v1678
    %v1734 = vsel %vm587, %v1678, %v1680
    %v1735 = vsel %vm587, %v1682, %v1684
    %v1736 = vsel %vm587, %v1684, %v1686
    %v1737 = vsel %vm587, %v1686, %v1688
    %v1738 = vsel %vm587, %v1688, %v1690
    %v1739 = vsel %vm587, %v1692, %v1694
    %v1740 = vsel %vm587, %v1694, %v1696
    %v1741 = vsel %vm587, %v1696, %v1698
    %v1742 = vsel %vm587, %v1698, %v1700
    %v1743 = vsel %vm587, %v1702, %v1704
    %v1744 = vsel %vm587, %v1704, %v1706
    %v1745 = vsel %vm587, %v1706, %v1708
    %v1746 = vsel %vm587, %v1708, %v1710
    %v1784 = vsel %vm921, %v1119, 0
    %1786 = vmatprep.subr.mxu0 0.0
    %1787 = vmatpush1.msra.mxu0 0.0
    %1788 = vmatprep.subr.mxu0 0.0
    %1789 = vmatpush1.msra.mxu0 0.0
    %1790 = vmatprep.subr.mxu0 0.0
    %1791 = vmatpush1.msra.mxu0 0.0
    %1792 = vmatprep.subr.mxu0 0.0
    %1793 = vmatpush1.msra.mxu0 0.0
    %1794 = vmatprep.subr.mxu0 0.0
    %1795 = vmatpush1.msra.mxu0 0.0
    %1796 = vmatprep.subr.mxu0 0.0
    %1797 = vmatpush1.msra.mxu0 0.0
    %1798 = vmatprep.subr.mxu0 0.0
    %1799 = vmatpush1.msra.mxu0 0.0
    %1800 = vmatprep.subr.mxu0 %v1744
    %1801 = vmatpush1.msra.mxu0 %v1743
    %1802 = vmatprep.subr.mxu0 %v1740
    %1803 = vmatpush1.msra.mxu0 %v1739
    %1804 = vmatprep.subr.mxu0 %v1736
    %1805 = vmatpush1.msra.mxu0 %v1735
    %1806 = vmatprep.subr.mxu0 %v1732
    %1807 = vmatpush1.msra.mxu0 %v1731
    %1808 = vmatprep.subr.mxu0 %v1728
    %1809 = vmatpush1.msra.mxu0 %v1727
    %1810 = vmatprep.subr.mxu0 %v1724
    %1811 = vmatpush1.msra.mxu0 %v1723
    %1812 = vmatprep.subr.mxu0 %v1720
    %1813 = vmatpush1.msra.mxu0 %v1719
    %1814 = vmatprep.subr.mxu0 %v1716
    %1815 = vmatpush1.msra.mxu0 %v1715
    %1816 = vmatprep.subr.mxu0 %v1712
    %1817 = vmatpush1.msra.mxu0 %v1711
    %1818 = vmatprep.subr.mxu0 0.0
    %1819 = vmatpush2.msra.mxu0 0.0
    %1820 = vmatprep.subr.mxu0 0.0
    %1821 = vmatpush2.msra.mxu0 0.0
    %1822 = vmatprep.subr.mxu0 0.0
    %1823 = vmatpush2.msra.mxu0 0.0
    %1824 = vmatprep.subr.mxu0 0.0
    %1825 = vmatpush2.msra.mxu0 0.0
    %1826 = vmatprep.subr.mxu0 0.0
    %1827 = vmatpush2.msra.mxu0 0.0
    %1828 = vmatprep.subr.mxu0 0.0
    %1829 = vmatpush2.msra.mxu0 0.0
    %1830 = vmatprep.subr.mxu0 0.0
    %1831 = vmatpush2.msra.mxu0 0.0
    %1832 = vmatprep.subr.mxu0 0.0
    %1833 = vmatpush2.msra.mxu0 0.0
    %1834 = vmatprep.subr.mxu0 0.0
    %1835 = vmatpush2.msra.mxu0 0.0
    %1836 = vmatprep.subr.mxu0 0.0
    %1837 = vmatpush2.msra.mxu0 0.0
    %1838 = vmatprep.subr.mxu0 0.0
    %1839 = vmatpush2.msra.mxu0 0.0
    %1840 = vmatprep.subr.mxu0 0.0
    %1841 = vmatpush2.msra.mxu0 0.0
    %1842 = vmatprep.subr.mxu0 0.0
    %1843 = vmatpush2.msra.mxu0 0.0
    %1844 = vmatprep.subr.mxu0 0.0
    %1845 = vmatpush2.msra.mxu0 0.0
    %1846 = vmatprep.subr.mxu0 0.0
    %1847 = vmatpush2.msra.mxu0 0.0
    %1848 = vmatprep.subr.mxu0 0.0
    %1849 = vmatpush2.msra.mxu0 0.0
    %1850 = vmatprep.mubr.f32.mxu0 0.0
    %1851 = vmatmul.mubr.f32.gmra.mxu0 %v1784
    %v1852 = vpop.f32.mrf.mxu0
    %v1853 = vadd.f32 0.0, %v1852
    %v1854 = vpop.f32.mrf.mxu0
    %v1855 = vadd.f32 0.0, %v1854
    %1856 = vdwg.mxu0
    %1857 = vmatprep.subr.mxu0 0.0
    %1858 = vmatpush1.msra.mxu0 0.0
    %1859 = vmatprep.subr.mxu0 0.0
    %1860 = vmatpush1.msra.mxu0 0.0
    %1861 = vmatprep.subr.mxu0 0.0
    %1862 = vmatpush1.msra.mxu0 0.0
    %1863 = vmatprep.subr.mxu0 0.0
    %1864 = vmatpush1.msra.mxu0 0.0
    %1865 = vmatprep.subr.mxu0 0.0
    %1866 = vmatpush1.msra.mxu0 0.0
    %1867 = vmatprep.subr.mxu0 0.0
    %1868 = vmatpush1.msra.mxu0 0.0
    %1869 = vmatprep.subr.mxu0 0.0
    %1870 = vmatpush1.msra.mxu0 0.0
    %1871 = vmatprep.subr.mxu0 %v1746
    %1872 = vmatpush1.msra.mxu0 %v1745
    %1873 = vmatprep.subr.mxu0 %v1742
    %1874 = vmatpush1.msra.mxu0 %v1741
    %1875 = vmatprep.subr.mxu0 %v1738
    %1876 = vmatpush1.msra.mxu0 %v1737
    %1877 = vmatprep.subr.mxu0 %v1734
    %1878 = vmatpush1.msra.mxu0 %v1733
    %1879 = vmatprep.subr.mxu0 %v1730
    %1880 = vmatpush1.msra.mxu0 %v1729
    %1881 = vmatprep.subr.mxu0 %v1726
    %1882 = vmatpush1.msra.mxu0 %v1725
    %1883 = vmatprep.subr.mxu0 %v1722
    %1884 = vmatpush1.msra.mxu0 %v1721
    %1885 = vmatprep.subr.mxu0 %v1718
    %1886 = vmatpush1.msra.mxu0 %v1717
    %1887 = vmatprep.subr.mxu0 %v1714
    %1888 = vmatpush1.msra.mxu0 %v1713
    %1889 = vmatprep.subr.mxu0 0.0
    %1890 = vmatpush2.msra.mxu0 0.0
    %1891 = vmatprep.subr.mxu0 0.0
    %1892 = vmatpush2.msra.mxu0 0.0
    %1893 = vmatprep.subr.mxu0 0.0
    %1894 = vmatpush2.msra.mxu0 0.0
    %1895 = vmatprep.subr.mxu0 0.0
    %1896 = vmatpush2.msra.mxu0 0.0
    %1897 = vmatprep.subr.mxu0 0.0
    %1898 = vmatpush2.msra.mxu0 0.0
    %1899 = vmatprep.subr.mxu0 0.0
    %1900 = vmatpush2.msra.mxu0 0.0
    %1901 = vmatprep.subr.mxu0 0.0
    %1902 = vmatpush2.msra.mxu0 0.0
    %1903 = vmatprep.subr.mxu0 0.0
    %1904 = vmatpush2.msra.mxu0 0.0
    %1905 = vmatprep.subr.mxu0 0.0
    %1906 = vmatpush2.msra.mxu0 0.0
    %1907 = vmatprep.subr.mxu0 0.0
    %1908 = vmatpush2.msra.mxu0 0.0
    %1909 = vmatprep.subr.mxu0 0.0
    %1910 = vmatpush2.msra.mxu0 0.0
    %1911 = vmatprep.subr.mxu0 0.0
    %1912 = vmatpush2.msra.mxu0 0.0
    %1913 = vmatprep.subr.mxu0 0.0
    %1914 = vmatpush2.msra.mxu0 0.0
    %1915 = vmatprep.subr.mxu0 0.0
    %1916 = vmatpush2.msra.mxu0 0.0
    %1917 = vmatprep.subr.mxu0 0.0
    %1918 = vmatpush2.msra.mxu0 0.0
    %1919 = vmatprep.subr.mxu0 0.0
    %1920 = vmatpush2.msra.mxu0 0.0
    %1921 = vmatprep.mubr.f32.mxu0 0.0
    %1922 = vmatmul.mubr.f32.gmra.mxu0 %v1784
    %v1923 = vpop.f32.mrf.mxu0
    %v1924 = vadd.f32 0.0, %v1923
    %v1925 = vpop.f32.mrf.mxu0
    %v1926 = vadd.f32 0.0, %v1925
    %1927 = vdwg.mxu0
    %v1928 = vld [vmem:[%s6] sm:$0xff]
    %v1929 = vld [vmem:[%s7] sm:$0xff]
    %v1930 = vadd.f32 %v1853, %v1855
    %v1931 = vadd.f32 %v1930, %v1924
    %v1932 = vadd.f32 %v1931, %v1926
    %1933 = vadd.xlane.f32.xlu0 %v1932
    %v1934 = vpop.xlane.xlu0 %1933
    %v1935 = vmul.f32 %v1934, 0.001953125
    %v1936 = vmul.f32 %v1853, %v1853
    %v1937 = vmul.f32 %v1855, %v1855
    %v1938 = vmul.f32 %v1924, %v1924
    %v1939 = vmul.f32 %v1926, %v1926
    %v1940 = vadd.f32 %v1936, %v1937
    %v1941 = vadd.f32 %v1940, %v1938
    %v1942 = vadd.f32 %v1941, %v1939
    %1943 = vadd.xlane.f32.xlu0 %v1942
    %v1944 = vpop.xlane.xlu0 %1943
    %v1945 = vmul.f32 %v1944, 0.001953125
    %v1946 = vmul.f32 %v1935, %v1935
    %v1947 = vsub.f32 %v1945, %v1946
    %v1948 = vmax.f32 %v1947, 0.0
    %v1949 = vadd.f32 %v1948, 1e-05
    %v1950 = vrsqrt.pop %v1949
    %v1951 = vmul.f32 %v1928, %v1950
    %1953 = vset.pattern.permute.xlu0 0
    %1954 = vperm.xlu0 %1953, %v1951
    %v1955 = vpop.permute.xlu0 %1954
    %v1957 = vmul.f32 %v1853, %v1955
    %v1958 = vmul.f32 %v1855, %v1955
    %v1959 = vmul.f32 %v1924, %v1955
    %v1960 = vmul.f32 %v1926, %v1955
    %v1961 = vmul.f32 %v1935, %v1951
    %v1962 = vsub.f32 %v1929, %v1961
    %1964 = vset.pattern.permute.xlu0 0
    %1965 = vperm.xlu0 %1964, %v1962
    %v1966 = vpop.permute.xlu0 %1965
    %v1968 = vadd.f32 %v1957, %v1966
    %v1969 = vadd.f32 %v1958, %v1966
    %v1970 = vadd.f32 %v1959, %v1966
    %v1971 = vadd.f32 %v1960, %v1966
    %v1972 = vadd.f32 %v1968, %v165
    %v1973 = vadd.f32 %v1969, %v167
    %v1974 = vadd.f32 %v1970, %v236
    %v1975 = vadd.f32 %v1971, %v238
    %1976 = vst [vmem:[#allocation9] sm:$0xff] %v1972
    %1977 = vst [vmem:[#allocation9 + $0x8] sm:$0xff] %v1973
    %s1978 = scalar_lea.vmem [#allocation9], 16
    %1979 = vst [vmem:[%s1978] sm:$0xff] %v1974
    %1980 = vst [vmem:[%s1978 + $0x8] sm:$0xff] %v1975
    // Predicated region
    $region50: #{tpu_custom_call.1} parent=1 // pred_check
      _
    $region51: #{tpu_custom_call.1} parent=1 // pred_check_branch
      %1982 = sbr.rel (0) target = $region53
    $region52: #{tpu_custom_call.1} parent=1 // pred_region
      %s1984 = ssub.s32 512, 512
      %1985 = vsyncadd [#allocation5], %s1984
      %s1986 = sshll.u32 [#allocation9], 4
      %s1987 = int_to_ptr.vmem [resolvable:$true] %s1986
      %1992 = dma.vmem_to_hbm [thread:$0]  %s1987, 512, %s9, [#allocation5], 256, 256, 16
    $region53: #{tpu_custom_call.1} parent=1 // pred_fallthru
      _
    // Predicated region
    $region54: #{tpu_custom_call.1} parent=1 // pred_check
      _
    $region55: #{tpu_custom_call.1} parent=1 // pred_check_branch
      %1994 = sbr.rel (0) target = $region57
    $region56: #{tpu_custom_call.1} parent=1 // pred_region
      %1995 = dma.done [#allocation5], 512
    $region57: #{tpu_custom_call.1} parent=1 // pred_fallthru
      _
    %1996 = vsyncpa [#allocation4], 1
    %1997 = vsyncpa [#allocation7], 1
    %1998 = vsyncpa [#allocation5], 1

</llo_original>
